<compile_context>
chip_gen: v5e
topology: v5e:2x2
jax: 0.10.0
libtpu: 0.0.40
codegen_flags: <defaults>
</compile_context>

<pallas_src>
import functools

import jax
import jax.numpy as jnp
from jax.experimental import pallas as pl
from jax.experimental.pallas import tpu as pltpu


# ----------------------------------------------------------------------------
# helpers
# ----------------------------------------------------------------------------
def _round_up(n, m):
    return ((n + m - 1) // m) * m


def _row_tile(n, pref=256):
    """Row tile: multiple of 8, at most `pref`; rows get padded to a multiple."""
    return min(pref, _round_up(n, 8))


def _vmem_capacity_bytes():
    try:
        info = pltpu.get_tpu_info()
        return int(getattr(info, "vmem_capacity_bytes", 64 * 1024 * 1024))
    except Exception:
        return 64 * 1024 * 1024


_VMEM_LIMIT = min(int(0.8 * _vmem_capacity_bytes()), 100 * 1024 * 1024)


def _cparams(dims):
    return pltpu.CompilerParams(dimension_semantics=dims,
                                vmem_limit_bytes=_VMEM_LIMIT)


def _pad_rows(x, rows_pad):
    pad = rows_pad - x.shape[0]
    if pad == 0:
        return x
    return jnp.pad(x, [(0, pad)] + [(0, 0)] * (x.ndim - 1))


# ----------------------------------------------------------------------------
# Kernel 1: fused Linear  y = act(x @ W + b)   (+ variant fusing the concat)
# ----------------------------------------------------------------------------
def _linear_kernel(x_ref, w_ref, b_ref, o_ref, *, act):
    y = jnp.dot(x_ref[...], w_ref[...], preferred_element_type=jnp.float32)
    y = y + b_ref[...]
    if act == "relu":
        y = jnp.maximum(y, 0.0)
    o_ref[...] = y.astype(o_ref.dtype)


def linear(x, w, b, act="none", tile=256):
    m, k = x.shape
    n = w.shape[1]
    t = min(tile, m)
    return pl.pallas_call(
        functools.partial(_linear_kernel, act=act),
        out_shape=jax.ShapeDtypeStruct((m, n), jnp.float32),
        grid_spec=pltpu.PrefetchScalarGridSpec(
            num_scalar_prefetch=0,
            grid=(m // t,),
            in_specs=[
                pl.BlockSpec((t, k), lambda i: (i, 0)),
                pl.BlockSpec((k, n), lambda i: (0, 0)),
                pl.BlockSpec((1, n), lambda i: (0, 0)),
            ],
            out_specs=pl.BlockSpec((t, n), lambda i: (i, 0)),
        ),
        compiler_params=_cparams(("parallel",)),
    )(x, w, b)


def _linear_cat_kernel(x1_ref, x2_ref, w1_ref, w2_ref, b_ref, o_ref, *, act):
    y = jnp.dot(x1_ref[...], w1_ref[...], preferred_element_type=jnp.float32)
    y = y + jnp.dot(x2_ref[...], w2_ref[...], preferred_element_type=jnp.float32)
    y = y + b_ref[...]
    if act == "relu":
        y = jnp.maximum(y, 0.0)
    o_ref[...] = y.astype(o_ref.dtype)


def linear_cat(x1, x2, w, b, act="none", tile=256):
    """act(concat(x1, x2, axis=1) @ w + b) without materializing the concat."""
    m, d1 = x1.shape
    d2 = x2.shape[1]
    n = w.shape[1]
    w1, w2 = w[:d1], w[d1:]
    t = min(tile, m)
    return pl.pallas_call(
        functools.partial(_linear_cat_kernel, act=act),
        out_shape=jax.ShapeDtypeStruct((m, n), jnp.float32),
        grid_spec=pltpu.PrefetchScalarGridSpec(
            num_scalar_prefetch=0,
            grid=(m // t,),
            in_specs=[
                pl.BlockSpec((t, d1), lambda i: (i, 0)),
                pl.BlockSpec((t, d2), lambda i: (i, 0)),
                pl.BlockSpec((d1, n), lambda i: (0, 0)),
                pl.BlockSpec((d2, n), lambda i: (0, 0)),
                pl.BlockSpec((1, n), lambda i: (0, 0)),
            ],
            out_specs=pl.BlockSpec((t, n), lambda i: (i, 0)),
        ),
        compiler_params=_cparams(("parallel",)),
    )(x1, x2, w1, w2, b)


# ----------------------------------------------------------------------------
# Kernel 2: per-class rsqrt degrees straight from r_pad (no [C,U,V] one-hot)
# ----------------------------------------------------------------------------
def _degree_kernel(r_ref, rsdu_ref, rsdv_ref, acc_ref):
    c = pl.program_id(0)
    i = pl.program_id(1)

    @pl.when(i == 0)
    def _():
        acc_ref[...] = jnp.zeros_like(acc_ref)

    mask = (r_ref[...] == c).astype(jnp.float32)                  # [t, Vp]
    du = jnp.sum(mask, axis=1, keepdims=True)                     # [t, 1]
    rsdu_ref[0] = jax.lax.rsqrt(jnp.maximum(du, 1.0))
    acc_ref[...] = acc_ref[...] + jnp.sum(mask, axis=0, keepdims=True)

    @pl.when(i == pl.num_programs(1) - 1)
    def _():
        rsdv_ref[0] = jax.lax.rsqrt(jnp.maximum(acc_ref[...], 1.0))


def rsqrt_degrees(r_pad, num_classes, tile):
    up, vp = r_pad.shape
    t = min(tile, up)
    return pl.pallas_call(
        _degree_kernel,
        out_shape=(jax.ShapeDtypeStruct((num_classes, up, 1), jnp.float32),
                   jax.ShapeDtypeStruct((num_classes, 1, vp), jnp.float32)),
        grid_spec=pltpu.PrefetchScalarGridSpec(
            num_scalar_prefetch=0,
            grid=(num_classes, up // t),
            in_specs=[pl.BlockSpec((t, vp), lambda c, i: (i, 0))],
            out_specs=(pl.BlockSpec((1, t, 1), lambda c, i: (c, i, 0)),
                       pl.BlockSpec((1, 1, vp), lambda c, i: (c, 0, 0))),
            scratch_shapes=[pltpu.VMEM((1, vp), jnp.float32)],
        ),
        compiler_params=_cparams(("parallel", "arbitrary")),
    )(r_pad)


# ----------------------------------------------------------------------------
# Kernel 3: hoisted per-class feature transform  fw[r] = (rs_deg_other[r]*feat) @ W_r
# ----------------------------------------------------------------------------
def _feat_transform_kernel(feat_ref, dother_ref, w_ref, fw_ref):
    scaled = (feat_ref[...] * dother_ref[0]).astype(jnp.bfloat16)    # [cols, E]
    w = w_ref[0].astype(jnp.bfloat16)                                # [E, H]
    fw_ref[0] = jnp.dot(scaled, w,
                        preferred_element_type=jnp.float32).astype(jnp.bfloat16)


def feat_transform(feat, dother_col, w_cum):
    cols, e = feat.shape
    c, _, h = w_cum.shape
    return pl.pallas_call(
        _feat_transform_kernel,
        out_shape=jax.ShapeDtypeStruct((c, cols, h), jnp.bfloat16),
        grid_spec=pltpu.PrefetchScalarGridSpec(
            num_scalar_prefetch=0,
            grid=(c,),
            in_specs=[
                pl.BlockSpec((cols, e), lambda r: (0, 0)),
                pl.BlockSpec((1, cols, 1), lambda r: (r, 0, 0)),
                pl.BlockSpec((1, e, h), lambda r: (r, 0, 0)),
            ],
            out_specs=pl.BlockSpec((1, cols, h), lambda r: (r, 0, 0)),
        ),
        compiler_params=_cparams(("parallel",)),
    )(feat, dother_col, w_cum)


# ----------------------------------------------------------------------------
# Kernel 4: GraphConvolution message passing (one side per call)
#   out = tanh( sum_r diag(rs_self_r) . (r==r_mask) @ fw_r + b )
# ----------------------------------------------------------------------------
def _gcl_side_kernel(r_ref, dself_ref, fw_ref, b_ref, out_ref, acc_ref):
    r = pl.program_id(1)

    @pl.when(r == 0)
    def _():
        acc_ref[...] = jnp.zeros_like(acc_ref)

    # 0/1 adjacency mask for class r (exact in bf16 -> bf16 MXU, f32 accumulate);
    # degree scalings are factored out of the [t, cols] tile.
    mask = (r_ref[...] == r).astype(jnp.bfloat16)                        # [t, cols]
    msg = jnp.dot(mask, fw_ref[0], preferred_element_type=jnp.float32)   # [t, H]
    acc_ref[...] = acc_ref[...] + dself_ref[0] * msg

    @pl.when(r == pl.num_programs(1) - 1)
    def _():
        out_ref[...] = jnp.tanh(acc_ref[...] + b_ref[...])


def _graph_conv_side(r_mat, dself_col, fw_all, bias, tile):
    rows, cols = r_mat.shape
    c, _, h = fw_all.shape
    t = min(tile, rows)
    return pl.pallas_call(
        _gcl_side_kernel,
        out_shape=jax.ShapeDtypeStruct((rows, h), jnp.float32),
        grid_spec=pltpu.PrefetchScalarGridSpec(
            num_scalar_prefetch=0,
            grid=(rows // t, c),
            in_specs=[
                pl.BlockSpec((t, cols), lambda i, r: (i, 0)),        # ratings tile
                pl.BlockSpec((1, t, 1), lambda i, r: (r, i, 0)),     # rsqrt deg (self)
                pl.BlockSpec((1, cols, h), lambda i, r: (r, 0, 0)),  # hoisted fw_r (bf16)
                pl.BlockSpec((1, h), lambda i, r: (0, 0)),           # bias
            ],
            out_specs=pl.BlockSpec((t, h), lambda i, r: (i, 0)),
            scratch_shapes=[pltpu.VMEM((t, h), jnp.float32)],
        ),
        compiler_params=_cparams(("parallel", "arbitrary")),
    )(r_mat, dself_col, fw_all, bias)


def graph_conv(r_pad, r_pad_t, u_z, v_z, w_cum, b_u, b_v,
               rsdu_col, rsdv_col, tile_u, tile_v):
    # per-class feature transforms computed ONCE (not per row tile), bf16
    fw_u = feat_transform(v_z, rsdv_col, w_cum)    # [C, V_pad, H]
    fw_v = feat_transform(u_z, rsdu_col, w_cum)    # [C, U_pad, H]
    u_out = _graph_conv_side(r_pad, rsdu_col, fw_u, b_u, tile_u)
    v_out = _graph_conv_side(r_pad_t, rsdv_col, fw_v, b_v, tile_v)
    return u_out, v_out


# ----------------------------------------------------------------------------
# Kernel 5: BilinearMixture decoder + softmax + loss partial sums
# ----------------------------------------------------------------------------
def _decoder_kernel(uh_ref, vt_ref, p_ref, r_ref, a_sm, cls_sm,
                    logits_ref, psum_ref, *, nb, num_classes):
    u = uh_ref[...].astype(jnp.bfloat16)           # [tu, H2]
    vt = vt_ref[...]                               # [H2, Vp] bf16 (pre-transposed)
    r_tile = r_ref[...]                            # [tu, Vp] int32
    valid = (r_tile >= 0).astype(jnp.float32)      # padded cells carry -1

    # nb bilinear basis maps  u @ P_b @ v^T  (bf16 MXU operands, f32 accumulate)
    basis = []
    for b in range(nb):
        uw = jnp.dot(u, p_ref[b].astype(jnp.bfloat16),
                     preferred_element_type=jnp.float32)                # [tu, H2]
        basis.append(jnp.dot(uw.astype(jnp.bfloat16), vt,
                             preferred_element_type=jnp.float32))       # [tu, Vp]

    # pass 1: class-major lane-dense logits + running max over the class axis
    m = None
    for c in range(num_classes):
        lc = basis[0] * a_sm[0, c]
        for b in range(1, nb):
            lc = lc + basis[b] * a_sm[b, c]
        logits_ref[c] = lc
        m = lc if m is None else jnp.maximum(m, lc)

    # pass 2: re-read logits from the resident output block (keeps the live-slab
    # count low), softmax over C, expected rating, CE terms
    s = jnp.zeros_like(m)
    num = jnp.zeros_like(m)
    logit_true = jnp.zeros_like(m)
    true_r = jnp.zeros_like(m)
    for c in range(num_classes):
        lc = logits_ref[c]
        e = jnp.exp(lc - m)
        s = s + e
        num = num + e * cls_sm[c]
        sel = (r_tile == c)
        logit_true = jnp.where(sel, lc, logit_true)
        true_r = jnp.where(sel, cls_sm[c], true_r)

    mhat = num / s                                  # exact reciprocal (parity)
    nll = (m + jnp.log(s)) - logit_true
    diff = mhat - true_r

    # per-tile partial sums -> each grid step owns its own output block, so the
    # row axis can be "parallel" (megacore / v7x 2-TC safe, no shared accumulator)
    nll_sum = jnp.sum(nll * valid)
    sq_sum = jnp.sum(diff * diff * valid)
    lane = jax.lax.broadcasted_iota(jnp.int32, (1, 128), 1)
    psum_ref[0] = (nll_sum * (lane == 0).astype(jnp.float32)
                   + sq_sum * (lane == 1).astype(jnp.float32))


def _decoder_row_tile(base, num_classes, vp, h2, nb):
    """Largest tile (divisor of `base`, multiple of 8) whose working set fits VMEM."""
    budget = int(0.55 * _vmem_capacity_bytes())
    resident = 2 * (h2 * vp * 2 + nb * h2 * h2 * 4)      # v^T (bf16) + P (f32), 2-buffered
    per_row = 4 * (2 * num_classes * vp                  # double-buffered logits block
                   + 10 * vp                             # live f32 slabs (basis/softmax)
                   + 2 * vp                              # r tile (int32, 2-buffered)
                   + 2 * h2)                             # u tile
    avail = max(budget - resident, 8 * per_row)
    cap = max(8, avail // per_row)
    t = base
    while t > cap and t % 2 == 0 and (t // 2) % 8 == 0 and base % (t // 2) == 0:
        t //= 2
    return t


def bilinear_decoder(u_h, v_h, P, a_coef, class_values, r_pad, tile):
    up, h2 = u_h.shape
    vp = v_h.shape[0]
    nb, num_classes = a_coef.shape
    tu = _decoder_row_tile(min(tile, up), num_classes, vp, h2, nb)
    n_tiles = up // tu
    v_t = jnp.transpose(v_h).astype(jnp.bfloat16)        # [H2, Vp], paid once in HBM

    return pl.pallas_call(
        functools.partial(_decoder_kernel, nb=nb, num_classes=num_classes),
        out_shape=(jax.ShapeDtypeStruct((num_classes, up, vp), jnp.float32),
                   jax.ShapeDtypeStruct((n_tiles, 1, 128), jnp.float32)),
        grid_spec=pltpu.PrefetchScalarGridSpec(
            num_scalar_prefetch=0,
            grid=(n_tiles,),
            in_specs=[
                pl.BlockSpec((tu, h2), lambda i: (i, 0)),               # u_h tile
                pl.BlockSpec((h2, vp), lambda i: (0, 0)),               # v_h^T (resident)
                pl.BlockSpec((nb, h2, h2), lambda i: (0, 0, 0)),        # P bases
                pl.BlockSpec((tu, vp), lambda i: (i, 0)),               # ratings tile
                pl.BlockSpec(memory_space=pltpu.MemorySpace.SMEM),      # a_coef (nb, C)
                pl.BlockSpec(memory_space=pltpu.MemorySpace.SMEM),      # class_values (C,)
            ],
            out_specs=(pl.BlockSpec((num_classes, tu, vp), lambda i: (0, i, 0)),
                       pl.BlockSpec((1, 1, 128), lambda i: (i, 0, 0))),
        ),
        compiler_params=_cparams(("parallel",)),
    )(u_h, v_t, P, r_pad, a_coef, class_values.astype(jnp.float32))


# ----------------------------------------------------------------------------
# AMG forward (glue in plain JAX, compute in the Pallas kernels above)
# ----------------------------------------------------------------------------
def amg_forward(params, u_features, v_features, u_side, v_side, r_matrix,
                class_values):
    U = u_features.shape[0]
    V = v_features.shape[0]
    C = class_values.shape[0]

    # row tiles + padding (pad instead of shrinking tiles to odd divisors)
    t_u = _row_tile(U)
    t_v = _row_tile(V)
    u_pad = _round_up(U, t_u)
    v_pad = _round_up(V, t_v)

    r_pad = jnp.pad(r_matrix, ((0, u_pad - U), (0, v_pad - V)), constant_values=-1)
    r_pad_t = jnp.transpose(r_pad)

    u_feat_p = _pad_rows(u_features, u_pad)
    u_side_p = _pad_rows(u_side, u_pad)
    v_feat_p = _pad_rows(v_features, v_pad)
    v_side_p = _pad_rows(v_side, v_pad)

    # denseu1 / densev1 (+relu); the feature/side concat is fused into the kernel
    u_z = linear_cat(u_feat_p, u_side_p, params["w_u1"], params["b_u1"],
                     act="relu", tile=t_u)
    v_z = linear_cat(v_feat_p, v_side_p, params["w_v1"], params["b_v1"],
                     act="relu", tile=t_v)

    # per-class rsqrt degrees straight from r_pad (no dense one-hot in HBM)
    rsdu_col, rsdv_row = rsqrt_degrees(r_pad, C, t_u)
    rsdv_col = jnp.transpose(rsdv_row, (0, 2, 1))          # [C, V_pad, 1]

    # ordinal weight sharing: W_r = sum_{s<=r} Q_s
    w_cum = jnp.cumsum(params["w_gc"], axis=0)

    # gcl1 message passing (adjacency mask built on the fly from r_pad)
    u_z, v_z = graph_conv(r_pad, r_pad_t, u_z, v_z, w_cum,
                          params["b_gc_u"], params["b_gc_v"],
                          rsdu_col, rsdv_col, t_u, t_v)

    # F.dropout(x, p=0.0) is the identity -> nothing to do
    u_h = linear(u_z, params["w_u2"], params["b_u2"], act="none", tile=t_u)
    v_h = linear(v_z, params["w_v2"], params["b_v2"], act="none", tile=t_v)

    # bilinear decoder + per-tile loss partial sums
    logits_cuv, psums = bilinear_decoder(
        u_h, v_h, params["P"], params["a"], class_values, r_pad, t_u)

    n_cells = jnp.float32(U * V)
    loss = jnp.sum(psums[:, 0, 0]) / n_cells
    rmse = jnp.sqrt(jnp.sum(psums[:, 0, 1]) / n_cells)

    # class-major [C, U, V] logits are the consumer-facing output (lane-dense;
    # no [C,U,V] -> [U,V,C] transpose round-trip through HBM).
    output = logits_cuv[:, :U, :V]
    return output, loss, rmse


# ----------------------------------------------------------------------------
# deterministic parameter init (synthetic; shapes follow the module __init__)
# ----------------------------------------------------------------------------
def _xavier(key, shape):
    fan_in, fan_out = shape[-2], shape[-1]
    std = (2.0 / (fan_in + fan_out)) ** 0.5
    return std * jax.random.normal(key, shape, jnp.float32)


def init_params(key, in_dim, emb_dim, hidden, num_classes, nb):
    ks = jax.random.split(key, 12)
    return {
        "w_u1": _xavier(ks[0], (in_dim, emb_dim)),
        "b_u1": jnp.zeros((1, emb_dim), jnp.float32),
        "w_v1": _xavier(ks[1], (in_dim, emb_dim)),
        "b_v1": jnp.zeros((1, emb_dim), jnp.float32),
        "w_gc": 0.1 * jax.random.normal(ks[2], (num_classes, emb_dim, hidden[0]),
                                        jnp.float32),
        "b_gc_u": jnp.zeros((1, hidden[0]), jnp.float32),
        "b_gc_v": jnp.zeros((1, hidden[0]), jnp.float32),
        "w_u2": _xavier(ks[3], (hidden[0], hidden[1])),
        "b_u2": jnp.zeros((1, hidden[1]), jnp.float32),
        "w_v2": _xavier(ks[4], (hidden[0], hidden[1])),
        "b_v2": jnp.zeros((1, hidden[1]), jnp.float32),
        "P": 0.1 * jax.random.normal(ks[5], (nb, hidden[1], hidden[1]), jnp.float32),
        "a": 0.1 * jax.random.normal(ks[6], (nb, num_classes), jnp.float32),
    }


if __name__ == "__main__":
    # small shapes consistent with the module
    num_users, num_items = 16, 16
    input_dim = 8
    num_side_features = 8
    emb_dim = 32
    hidden = (32, 16)
    nb = 2
    class_values = jnp.array([1.0, 2.0, 3.0, 4.0, 5.0], jnp.float32)
    num_classes = class_values.shape[0]
    # dropout = 0.0 -> F.dropout is identity (deterministic)

    key = jax.random.PRNGKey(0)
    k_feat, k_par, k_r = jax.random.split(key, 3)
    kf = jax.random.split(k_feat, 4)

    u_features = jax.random.normal(kf[0], (num_users, input_dim), jnp.float32)
    v_features = jax.random.normal(kf[1], (num_items, input_dim), jnp.float32)
    u_side = jax.random.normal(kf[2], (num_users, num_side_features), jnp.float32)
    v_side = jax.random.normal(kf[3], (num_items, num_side_features), jnp.float32)
    # r_matrix holds rating-class indices in [0, num_classes)
    r_matrix = jax.random.randint(k_r, (num_users, num_items), 0, num_classes,
                                  dtype=jnp.int32)

    params = init_params(k_par, num_side_features + input_dim, emb_dim, hidden,
                         num_classes, nb)

    fwd = jax.jit(functools.partial(amg_forward, class_values=class_values))
    output, loss, rmse = fwd(params, u_features, v_features, u_side, v_side,
                             r_matrix)
    jax.block_until_ready((output, loss, rmse))

    assert output.shape == (num_classes, num_users, num_items)
    assert jnp.isfinite(loss) and jnp.isfinite(rmse)
    print("KERNEL_OK")
</pallas_src>

<mosaic_0001>
module attributes {stable_mosaic.version = 11 : i64} {
  func.func @_linear_cat_kernel(%arg0: i32, %arg1: memref<16x8xf32, #tpu.memory_space<vmem>>, %arg2: memref<16x8xf32, #tpu.memory_space<vmem>>, %arg3: memref<8x32xf32, #tpu.memory_space<vmem>>, %arg4: memref<8x32xf32, #tpu.memory_space<vmem>>, %arg5: memref<1x32xf32, #tpu.memory_space<vmem>>, %arg6: memref<16x32xf32, #tpu.memory_space<vmem>>) attributes {dimension_semantics = [#tpu.dimension_semantics<parallel>], iteration_bounds = array<i64: 1>, scalar_prefetch = 0 : i64, scratch_operands = 0 : i64, tpu.core_type = #tpu.core_type<tc>, window_params = [{transform_indices = @transform_0, window_bounds = array<i64: 16, 8>}, {transform_indices = @transform_1, window_bounds = array<i64: 16, 8>}, {pipeline_mode = #tpu.pipeline_mode<synchronous>, transform_indices = @transform_2, window_bounds = array<i64: 8, 32>}, {pipeline_mode = #tpu.pipeline_mode<synchronous>, transform_indices = @transform_3, window_bounds = array<i64: 8, 32>}, {pipeline_mode = #tpu.pipeline_mode<synchronous>, transform_indices = @transform_4, window_bounds = array<i64: 1, 32>}, {transform_indices = @transform_5, window_bounds = array<i64: 16, 32>}]} {
    %c0 = arith.constant 0 : index
    %c0_0 = arith.constant 0 : index
    %0 = vector.load %arg1[%c0, %c0_0] : memref<16x8xf32, #tpu.memory_space<vmem>>, vector<16x8xf32>
    %c0_1 = arith.constant 0 : index
    %c0_2 = arith.constant 0 : index
    %1 = vector.load %arg3[%c0_1, %c0_2] : memref<8x32xf32, #tpu.memory_space<vmem>>, vector<8x32xf32>
    %cst = arith.constant dense<0.000000e+00> : vector<16x32xf32>
    %2 = tpu.matmul %0, %1, %cst {dimension_numbers = #tpu.dot_dimension_numbers<[1], [0], [0], [1], [0, 0, 1, 1], [], []>} : vector<16x8xf32>, vector<8x32xf32>, vector<16x32xf32> -> vector<16x32xf32>
    %c0_3 = arith.constant 0 : index
    %c0_4 = arith.constant 0 : index
    %3 = vector.load %arg2[%c0_3, %c0_4] : memref<16x8xf32, #tpu.memory_space<vmem>>, vector<16x8xf32>
    %c0_5 = arith.constant 0 : index
    %c0_6 = arith.constant 0 : index
    %4 = vector.load %arg4[%c0_5, %c0_6] : memref<8x32xf32, #tpu.memory_space<vmem>>, vector<8x32xf32>
    %cst_7 = arith.constant dense<0.000000e+00> : vector<16x32xf32>
    %5 = tpu.matmul %3, %4, %cst_7 {dimension_numbers = #tpu.dot_dimension_numbers<[1], [0], [0], [1], [0, 0, 1, 1], [], []>} : vector<16x8xf32>, vector<8x32xf32>, vector<16x32xf32> -> vector<16x32xf32>
    %6 = arith.addf %2, %5 : vector<16x32xf32>
    %c0_8 = arith.constant 0 : index
    %c0_9 = arith.constant 0 : index
    %7 = vector.load %arg5[%c0_8, %c0_9] : memref<1x32xf32, #tpu.memory_space<vmem>>, vector<1x32xf32>
    %8 = vector.broadcast %7 : vector<1x32xf32> to vector<16x32xf32>
    %9 = arith.addf %6, %8 : vector<16x32xf32>
    %cst_10 = arith.constant 0.000000e+00 : f32
    %10 = vector.broadcast %cst_10 : f32 to vector<16x32xf32>
    %11 = arith.maximumf %9, %10 : vector<16x32xf32>
    %c0_11 = arith.constant 0 : index
    %c0_12 = arith.constant 0 : index
    %12 = vector.load %arg6[%c0_11, %c0_12] : memref<16x32xf32, #tpu.memory_space<vmem>>, vector<16x32xf32>
    tpu.vector_store %arg6[%c0_11, %c0_12], %11 {strides = array<i32>} : memref<16x32xf32, #tpu.memory_space<vmem>>, vector<16x32xf32>,
    return
  }
  func.func @transform_0(%arg0: i32) -> (i32, i32) {
    %c0_i32 = arith.constant 0 : i32
    %c0_i32_0 = arith.constant 0 : i32
    return %arg0, %c0_i32 : i32, i32
  }
  func.func @transform_1(%arg0: i32) -> (i32, i32) {
    %c0_i32 = arith.constant 0 : i32
    %c0_i32_0 = arith.constant 0 : i32
    return %arg0, %c0_i32 : i32, i32
  }
  func.func @transform_2(%arg0: i32) -> (i32, i32) {
    %c0_i32 = arith.constant 0 : i32
    %c0_i32_0 = arith.constant 0 : i32
    %c0_i32_1 = arith.constant 0 : i32
    return %c0_i32, %c0_i32_0 : i32, i32
  }
  func.func @transform_3(%arg0: i32) -> (i32, i32) {
    %c0_i32 = arith.constant 0 : i32
    %c0_i32_0 = arith.constant 0 : i32
    %c0_i32_1 = arith.constant 0 : i32
    return %c0_i32, %c0_i32_0 : i32, i32
  }
  func.func @transform_4(%arg0: i32) -> (i32, i32) {
    %c0_i32 = arith.constant 0 : i32
    %c0_i32_0 = arith.constant 0 : i32
    %c0_i32_1 = arith.constant 0 : i32
    return %c0_i32, %c0_i32_0 : i32, i32
  }
  func.func @transform_5(%arg0: i32) -> (i32, i32) {
    %c0_i32 = arith.constant 0 : i32
    %c0_i32_0 = arith.constant 0 : i32
    return %arg0, %c0_i32 : i32, i32
  }
}

module attributes {stable_mosaic.version = 11 : i64} {
  func.func @_degree_kernel(%arg0: i32, %arg1: i32, %arg2: memref<16x16xi32, #tpu.memory_space<vmem>>, %arg3: memref<1x16x1xf32, #tpu.memory_space<vmem>>, %arg4: memref<1x1x16xf32, #tpu.memory_space<vmem>>, %arg5: memref<1x16xf32, #tpu.memory_space<vmem>>) attributes {dimension_semantics = [#tpu.dimension_semantics<parallel>, #tpu.dimension_semantics<arbitrary>], iteration_bounds = array<i64: 5, 1>, scalar_prefetch = 0 : i64, scratch_operands = 1 : i64, tpu.core_type = #tpu.core_type<tc>, window_params = [{transform_indices = @transform_0, window_bounds = array<i64: 16, 16>}, {transform_indices = @transform_1, window_bounds = array<i64: 1, 16, 1>}, {transform_indices = @transform_2, window_bounds = array<i64: 1, 1, 16>}]} {
    %c0_i32 = arith.constant 0 : i32
    %0 = arith.cmpi eq, %arg1, %c0_i32 : i32
    %1 = arith.extui %0 : i1 to i32
    %c0_i32_0 = arith.constant 0 : i32
    %2 = arith.cmpi ne, %1, %c0_i32_0 : i32
    scf.if %2 {
      %cst_13 = arith.constant 0.000000e+00 : f32
      %24 = vector.broadcast %cst_13 : f32 to vector<1x16xf32>
      %c0_14 = arith.constant 0 : index
      %c0_15 = arith.constant 0 : index
      %25 = vector.load %arg5[%c0_14, %c0_15] : memref<1x16xf32, #tpu.memory_space<vmem>>, vector<1x16xf32>
      tpu.vector_store %arg5[%c0_14, %c0_15], %24 {strides = array<i32>} : memref<1x16xf32, #tpu.memory_space<vmem>>, vector<1x16xf32>,
    } else {
    }
    %c0 = arith.constant 0 : index
    %c0_1 = arith.constant 0 : index
    %3 = vector.load %arg2[%c0, %c0_1] : memref<16x16xi32, #tpu.memory_space<vmem>>, vector<16x16xi32>
    %4 = vector.broadcast %arg0 : i32 to vector<16x16xi32>
    %5 = arith.cmpi eq, %3, %4 : vector<16x16xi32>
    %6 = arith.extui %5 : vector<16x16xi1> to vector<16x16xi32>
    %7 = arith.sitofp %6 : vector<16x16xi32> to vector<16x16xf32>
    %cst = arith.constant dense<0.000000e+00> : vector<16xf32>
    %8 = vector.multi_reduction <add>, %7, %cst [1] : vector<16x16xf32> to vector<16xf32>
    %9 = vector.shape_cast %8 : vector<16xf32> to vector<16x1xf32>
    %cst_2 = arith.constant 1.000000e+00 : f32
    %10 = vector.broadcast %cst_2 : f32 to vector<16x1xf32>
    %11 = arith.maximumf %9, %10 : vector<16x1xf32>
    %12 = math.rsqrt %11 : vector<16x1xf32>
    %c0_3 = arith.constant 0 : index
    %c0_4 = arith.constant 0 : index
    %c0_5 = arith.constant 0 : index
    %13 = vector.load %arg3[%c0_3, %c0_4, %c0_5] : memref<1x16x1xf32, #tpu.memory_space<vmem>>, vector<1x16x1xf32>
    %14 = vector.shape_cast %13 : vector<1x16x1xf32> to vector<16x1xf32>
    %15 = vector.shape_cast %12 : vector<16x1xf32> to vector<1x16x1xf32>
    tpu.vector_store %arg3[%c0_3, %c0_4, %c0_5], %15 {strides = array<i32>} : memref<1x16x1xf32, #tpu.memory_space<vmem>>, vector<1x16x1xf32>,
    %c0_6 = arith.constant 0 : index
    %c0_7 = arith.constant 0 : index
    %16 = vector.load %arg5[%c0_6, %c0_7] : memref<1x16xf32, #tpu.memory_space<vmem>>, vector<1x16xf32>
    %cst_8 = arith.constant dense<0.000000e+00> : vector<16xf32>
    %17 = vector.multi_reduction <add>, %7, %cst_8 [0] : vector<16x16xf32> to vector<16xf32>
    %18 = vector.shape_cast %17 : vector<16xf32> to vector<1x16xf32>
    %19 = arith.addf %16, %18 : vector<1x16xf32>
    %c0_9 = arith.constant 0 : index
    %c0_10 = arith.constant 0 : index
    %20 = vector.load %arg5[%c0_9, %c0_10] : memref<1x16xf32, #tpu.memory_space<vmem>>, vector<1x16xf32>
    tpu.vector_store %arg5[%c0_9, %c0_10], %19 {strides = array<i32>} : memref<1x16xf32, #tpu.memory_space<vmem>>, vector<1x16xf32>,
    %c0_i32_11 = arith.constant 0 : i32
    %21 = arith.cmpi eq, %arg1, %c0_i32_11 : i32
    %22 = arith.extui %21 : i1 to i32
    %c0_i32_12 = arith.constant 0 : i32
    %23 = arith.cmpi ne, %22, %c0_i32_12 : i32
    scf.if %23 {
      %c0_13 = arith.constant 0 : index
      %c0_14 = arith.constant 0 : index
      %24 = vector.load %arg5[%c0_13, %c0_14] : memref<1x16xf32, #tpu.memory_space<vmem>>, vector<1x16xf32>
      %cst_15 = arith.constant 1.000000e+00 : f32
      %25 = vector.broadcast %cst_15 : f32 to vector<1x16xf32>
      %26 = arith.maximumf %24, %25 : vector<1x16xf32>
      %27 = math.rsqrt %26 : vector<1x16xf32>
      %c0_16 = arith.constant 0 : index
      %c0_17 = arith.constant 0 : index
      %c0_18 = arith.constant 0 : index
      %28 = vector.load %arg4[%c0_16, %c0_17, %c0_18] : memref<1x1x16xf32, #tpu.memory_space<vmem>>, vector<1x1x16xf32>
      %29 = vector.shape_cast %28 : vector<1x1x16xf32> to vector<1x16xf32>
      %30 = vector.shape_cast %27 : vector<1x16xf32> to vector<1x1x16xf32>
      tpu.vector_store %arg4[%c0_16, %c0_17, %c0_18], %30 {strides = array<i32>} : memref<1x1x16xf32, #tpu.memory_space<vmem>>, vector<1x1x16xf32>,
    } else {
    }
    return
  }
  func.func @transform_0(%arg0: i32, %arg1: i32) -> (i32, i32) {
    %c0_i32 = arith.constant 0 : i32
    %c0_i32_0 = arith.constant 0 : i32
    return %arg1, %c0_i32 : i32, i32
  }
  func.func @transform_1(%arg0: i32, %arg1: i32) -> (i32, i32, i32) {
    %c0_i32 = arith.constant 0 : i32
    %c0_i32_0 = arith.constant 0 : i32
    return %arg0, %arg1, %c0_i32 : i32, i32, i32
  }
  func.func @transform_2(%arg0: i32, %arg1: i32) -> (i32, i32, i32) {
    %c0_i32 = arith.constant 0 : i32
    %c0_i32_0 = arith.constant 0 : i32
    %c0_i32_1 = arith.constant 0 : i32
    return %arg0, %c0_i32, %c0_i32_0 : i32, i32, i32
  }
}

module attributes {stable_mosaic.version = 11 : i64} {
  func.func @_feat_transform_kernel(%arg0: i32, %arg1: memref<16x32xf32, #tpu.memory_space<vmem>>, %arg2: memref<1x16x1xf32, #tpu.memory_space<vmem>>, %arg3: memref<1x32x32xf32, #tpu.memory_space<vmem>>, %arg4: memref<1x16x32xbf16, #tpu.memory_space<vmem>>) attributes {dimension_semantics = [#tpu.dimension_semantics<parallel>], iteration_bounds = array<i64: 5>, scalar_prefetch = 0 : i64, scratch_operands = 0 : i64, tpu.core_type = #tpu.core_type<tc>, window_params = [{pipeline_mode = #tpu.pipeline_mode<synchronous>, transform_indices = @transform_0, window_bounds = array<i64: 16, 32>}, {transform_indices = @transform_1, window_bounds = array<i64: 1, 16, 1>}, {transform_indices = @transform_2, window_bounds = array<i64: 1, 32, 32>}, {transform_indices = @transform_3, window_bounds = array<i64: 1, 16, 32>}]} {
    %c0 = arith.constant 0 : index
    %c0_0 = arith.constant 0 : index
    %0 = vector.load %arg1[%c0, %c0_0] : memref<16x32xf32, #tpu.memory_space<vmem>>, vector<16x32xf32>
    %c0_1 = arith.constant 0 : index
    %c0_2 = arith.constant 0 : index
    %c0_3 = arith.constant 0 : index
    %1 = vector.load %arg2[%c0_1, %c0_2, %c0_3] : memref<1x16x1xf32, #tpu.memory_space<vmem>>, vector<1x16x1xf32>
    %2 = vector.shape_cast %1 : vector<1x16x1xf32> to vector<16x1xf32>
    %3 = vector.broadcast %2 : vector<16x1xf32> to vector<16x32xf32>
    %4 = arith.mulf %0, %3 : vector<16x32xf32>
    %5 = arith.truncf %4 : vector<16x32xf32> to vector<16x32xbf16>
    %c0_4 = arith.constant 0 : index
    %c0_5 = arith.constant 0 : index
    %c0_6 = arith.constant 0 : index
    %6 = vector.load %arg3[%c0_4, %c0_5, %c0_6] : memref<1x32x32xf32, #tpu.memory_space<vmem>>, vector<1x32x32xf32>
    %7 = vector.shape_cast %6 : vector<1x32x32xf32> to vector<32x32xf32>
    %8 = arith.truncf %7 : vector<32x32xf32> to vector<32x32xbf16>
    %cst = arith.constant dense<0.000000e+00> : vector<16x32xf32>
    %9 = tpu.matmul %5, %8, %cst {dimension_numbers = #tpu.dot_dimension_numbers<[1], [0], [0], [1], [0, 0, 1, 1], [], []>} : vector<16x32xbf16>, vector<32x32xbf16>, vector<16x32xf32> -> vector<16x32xf32>
    %10 = arith.truncf %9 : vector<16x32xf32> to vector<16x32xbf16>
    %c0_7 = arith.constant 0 : index
    %c0_8 = arith.constant 0 : index
    %c0_9 = arith.constant 0 : index
    %11 = vector.load %arg4[%c0_7, %c0_8, %c0_9] : memref<1x16x32xbf16, #tpu.memory_space<vmem>>, vector<1x16x32xbf16>
    %12 = vector.shape_cast %11 : vector<1x16x32xbf16> to vector<16x32xbf16>
    %13 = vector.shape_cast %10 : vector<16x32xbf16> to vector<1x16x32xbf16>
    tpu.vector_store %arg4[%c0_7, %c0_8, %c0_9], %13 {strides = array<i32>} : memref<1x16x32xbf16, #tpu.memory_space<vmem>>, vector<1x16x32xbf16>,
    return
  }
  func.func @transform_0(%arg0: i32) -> (i32, i32) {
    %c0_i32 = arith.constant 0 : i32
    %c0_i32_0 = arith.constant 0 : i32
    %c0_i32_1 = arith.constant 0 : i32
    return %c0_i32, %c0_i32_0 : i32, i32
  }
  func.func @transform_1(%arg0: i32) -> (i32, i32, i32) {
    %c0_i32 = arith.constant 0 : i32
    %c0_i32_0 = arith.constant 0 : i32
    %c0_i32_1 = arith.constant 0 : i32
    return %arg0, %c0_i32, %c0_i32_0 : i32, i32, i32
  }
  func.func @transform_2(%arg0: i32) -> (i32, i32, i32) {
    %c0_i32 = arith.constant 0 : i32
    %c0_i32_0 = arith.constant 0 : i32
    %c0_i32_1 = arith.constant 0 : i32
    return %arg0, %c0_i32, %c0_i32_0 : i32, i32, i32
  }
  func.func @transform_3(%arg0: i32) -> (i32, i32, i32) {
    %c0_i32 = arith.constant 0 : i32
    %c0_i32_0 = arith.constant 0 : i32
    %c0_i32_1 = arith.constant 0 : i32
    return %arg0, %c0_i32, %c0_i32_0 : i32, i32, i32
  }
}

module attributes {stable_mosaic.version = 11 : i64} {
  func.func @_gcl_side_kernel(%arg0: i32, %arg1: i32, %arg2: memref<16x16xi32, #tpu.memory_space<vmem>>, %arg3: memref<1x16x1xf32, #tpu.memory_space<vmem>>, %arg4: memref<1x16x32xbf16, #tpu.memory_space<vmem>>, %arg5: memref<1x32xf32, #tpu.memory_space<vmem>>, %arg6: memref<16x32xf32, #tpu.memory_space<vmem>>, %arg7: memref<16x32xf32, #tpu.memory_space<vmem>>) attributes {dimension_semantics = [#tpu.dimension_semantics<parallel>, #tpu.dimension_semantics<arbitrary>], iteration_bounds = array<i64: 1, 5>, scalar_prefetch = 0 : i64, scratch_operands = 1 : i64, tpu.core_type = #tpu.core_type<tc>, window_params = [{transform_indices = @transform_0, window_bounds = array<i64: 16, 16>}, {transform_indices = @transform_1, window_bounds = array<i64: 1, 16, 1>}, {transform_indices = @transform_2, window_bounds = array<i64: 1, 16, 32>}, {pipeline_mode = #tpu.pipeline_mode<synchronous>, transform_indices = @transform_3, window_bounds = array<i64: 1, 32>}, {transform_indices = @transform_4, window_bounds = array<i64: 16, 32>}]} {
    %c0_i32 = arith.constant 0 : i32
    %0 = arith.cmpi eq, %arg1, %c0_i32 : i32
    %1 = arith.extui %0 : i1 to i32
    %c0_i32_0 = arith.constant 0 : i32
    %2 = arith.cmpi ne, %1, %c0_i32_0 : i32
    scf.if %2 {
      %cst_13 = arith.constant 0.000000e+00 : f32
      %22 = vector.broadcast %cst_13 : f32 to vector<16x32xf32>
      %c0_14 = arith.constant 0 : index
      %c0_15 = arith.constant 0 : index
      %23 = vector.load %arg7[%c0_14, %c0_15] : memref<16x32xf32, #tpu.memory_space<vmem>>, vector<16x32xf32>
      tpu.vector_store %arg7[%c0_14, %c0_15], %22 {strides = array<i32>} : memref<16x32xf32, #tpu.memory_space<vmem>>, vector<16x32xf32>,
    } else {
    }
    %c0 = arith.constant 0 : index
    %c0_1 = arith.constant 0 : index
    %3 = vector.load %arg2[%c0, %c0_1] : memref<16x16xi32, #tpu.memory_space<vmem>>, vector<16x16xi32>
    %4 = vector.broadcast %arg1 : i32 to vector<16x16xi32>
    %5 = arith.cmpi eq, %3, %4 : vector<16x16xi32>
    %6 = arith.extui %5 : vector<16x16xi1> to vector<16x16xi32>
    %7 = arith.sitofp %6 : vector<16x16xi32> to vector<16x16xf32>
    %8 = arith.truncf %7 : vector<16x16xf32> to vector<16x16xbf16>
    %c0_2 = arith.constant 0 : index
    %c0_3 = arith.constant 0 : index
    %c0_4 = arith.constant 0 : index
    %9 = vector.load %arg4[%c0_2, %c0_3, %c0_4] : memref<1x16x32xbf16, #tpu.memory_space<vmem>>, vector<1x16x32xbf16>
    %10 = vector.shape_cast %9 : vector<1x16x32xbf16> to vector<16x32xbf16>
    %cst = arith.constant dense<0.000000e+00> : vector<16x32xf32>
    %11 = tpu.matmul %8, %10, %cst {dimension_numbers = #tpu.dot_dimension_numbers<[1], [0], [0], [1], [0, 0, 1, 1], [], []>} : vector<16x16xbf16>, vector<16x32xbf16>, vector<16x32xf32> -> vector<16x32xf32>
    %c0_5 = arith.constant 0 : index
    %c0_6 = arith.constant 0 : index
    %12 = vector.load %arg7[%c0_5, %c0_6] : memref<16x32xf32, #tpu.memory_space<vmem>>, vector<16x32xf32>
    %c0_7 = arith.constant 0 : index
    %c0_8 = arith.constant 0 : index
    %c0_9 = arith.constant 0 : index
    %13 = vector.load %arg3[%c0_7, %c0_8, %c0_9] : memref<1x16x1xf32, #tpu.memory_space<vmem>>, vector<1x16x1xf32>
    %14 = vector.shape_cast %13 : vector<1x16x1xf32> to vector<16x1xf32>
    %15 = vector.broadcast %14 : vector<16x1xf32> to vector<16x32xf32>
    %16 = arith.mulf %15, %11 : vector<16x32xf32>
    %17 = arith.addf %12, %16 : vector<16x32xf32>
    %c0_10 = arith.constant 0 : index
    %c0_11 = arith.constant 0 : index
    %18 = vector.load %arg7[%c0_10, %c0_11] : memref<16x32xf32, #tpu.memory_space<vmem>>, vector<16x32xf32>
    tpu.vector_store %arg7[%c0_10, %c0_11], %17 {strides = array<i32>} : memref<16x32xf32, #tpu.memory_space<vmem>>, vector<16x32xf32>,
    %c4_i32 = arith.constant 4 : i32
    %19 = arith.cmpi eq, %arg1, %c4_i32 : i32
    %20 = arith.extui %19 : i1 to i32
    %c0_i32_12 = arith.constant 0 : i32
    %21 = arith.cmpi ne, %20, %c0_i32_12 : i32
    scf.if %21 {
      %c0_13 = arith.constant 0 : index
      %c0_14 = arith.constant 0 : index
      %22 = vector.load %arg7[%c0_13, %c0_14] : memref<16x32xf32, #tpu.memory_space<vmem>>, vector<16x32xf32>
      %c0_15 = arith.constant 0 : index
      %c0_16 = arith.constant 0 : index
      %23 = vector.load %arg5[%c0_15, %c0_16] : memref<1x32xf32, #tpu.memory_space<vmem>>, vector<1x32xf32>
      %24 = vector.broadcast %23 : vector<1x32xf32> to vector<16x32xf32>
      %25 = arith.addf %22, %24 : vector<16x32xf32>
      %26 = math.tanh %25 : vector<16x32xf32>
      %c0_17 = arith.constant 0 : index
      %c0_18 = arith.constant 0 : index
      %27 = vector.load %arg6[%c0_17, %c0_18] : memref<16x32xf32, #tpu.memory_space<vmem>>, vector<16x32xf32>
      tpu.vector_store %arg6[%c0_17, %c0_18], %26 {strides = array<i32>} : memref<16x32xf32, #tpu.memory_space<vmem>>, vector<16x32xf32>,
    } else {
    }
    return
  }
  func.func @transform_0(%arg0: i32, %arg1: i32) -> (i32, i32) {
    %c0_i32 = arith.constant 0 : i32
    %c0_i32_0 = arith.constant 0 : i32
    return %arg0, %c0_i32 : i32, i32
  }
  func.func @transform_1(%arg0: i32, %arg1: i32) -> (i32, i32, i32) {
    %c0_i32 = arith.constant 0 : i32
    %c0_i32_0 = arith.constant 0 : i32
    return %arg1, %arg0, %c0_i32 : i32, i32, i32
  }
  func.func @transform_2(%arg0: i32, %arg1: i32) -> (i32, i32, i32) {
    %c0_i32 = arith.constant 0 : i32
    %c0_i32_0 = arith.constant 0 : i32
    %c0_i32_1 = arith.constant 0 : i32
    return %arg1, %c0_i32, %c0_i32_0 : i32, i32, i32
  }
  func.func @transform_3(%arg0: i32, %arg1: i32) -> (i32, i32) {
    %c0_i32 = arith.constant 0 : i32
    %c0_i32_0 = arith.constant 0 : i32
    %c0_i32_1 = arith.constant 0 : i32
    return %c0_i32, %c0_i32_0 : i32, i32
  }
  func.func @transform_4(%arg0: i32, %arg1: i32) -> (i32, i32) {
    %c0_i32 = arith.constant 0 : i32
    %c0_i32_0 = arith.constant 0 : i32
    return %arg0, %c0_i32 : i32, i32
  }
}

module attributes {stable_mosaic.version = 11 : i64} {
  func.func @_decoder_kernel(%arg0: i32, %arg1: memref<16x16xf32, #tpu.memory_space<vmem>>, %arg2: memref<16x16xbf16, #tpu.memory_space<vmem>>, %arg3: memref<2x16x16xf32, #tpu.memory_space<vmem>>, %arg4: memref<16x16xi32, #tpu.memory_space<vmem>>, %arg5: memref<2x5xf32, #tpu.memory_space<smem>>, %arg6: memref<5xf32, #tpu.memory_space<smem>>, %arg7: memref<5x16x16xf32, #tpu.memory_space<vmem>>, %arg8: memref<1x1x128xf32, #tpu.memory_space<vmem>>) attributes {dimension_semantics = [#tpu.dimension_semantics<parallel>], iteration_bounds = array<i64: 1>, scalar_prefetch = 0 : i64, scratch_operands = 0 : i64, tpu.core_type = #tpu.core_type<tc>, window_params = [{transform_indices = @transform_0, window_bounds = array<i64: 16, 16>}, {pipeline_mode = #tpu.pipeline_mode<synchronous>, transform_indices = @transform_1, window_bounds = array<i64: 16, 16>}, {pipeline_mode = #tpu.pipeline_mode<synchronous>, transform_indices = @transform_2, window_bounds = array<i64: 2, 16, 16>}, {transform_indices = @transform_3, window_bounds = array<i64: 16, 16>}, {transform_indices = @transform_4, window_bounds = array<i64: 2, 5>}, {transform_indices = @transform_5, window_bounds = array<i64: 5>}, {transform_indices = @transform_6, window_bounds = array<i64: 5, 16, 16>}, {transform_indices = @transform_7, window_bounds = array<i64: 1, 1, 128>}]} {
    %c0 = arith.constant 0 : index
    %c0_0 = arith.constant 0 : index
    %0 = vector.load %arg1[%c0, %c0_0] : memref<16x16xf32, #tpu.memory_space<vmem>>, vector<16x16xf32>
    %1 = arith.truncf %0 : vector<16x16xf32> to vector<16x16xbf16>
    %c0_1 = arith.constant 0 : index
    %c0_2 = arith.constant 0 : index
    %2 = vector.load %arg2[%c0_1, %c0_2] : memref<16x16xbf16, #tpu.memory_space<vmem>>, vector<16x16xbf16>
    %c0_3 = arith.constant 0 : index
    %c0_4 = arith.constant 0 : index
    %3 = vector.load %arg4[%c0_3, %c0_4] : memref<16x16xi32, #tpu.memory_space<vmem>>, vector<16x16xi32>
    %c0_i32 = arith.constant 0 : i32
    %4 = vector.broadcast %c0_i32 : i32 to vector<16x16xi32>
    %5 = arith.cmpi sge, %3, %4 : vector<16x16xi32>
    %6 = arith.extui %5 : vector<16x16xi1> to vector<16x16xi32>
    %7 = arith.sitofp %6 : vector<16x16xi32> to vector<16x16xf32>
    %c0_5 = arith.constant 0 : index
    %c0_6 = arith.constant 0 : index
    %c0_7 = arith.constant 0 : index
    %8 = vector.load %arg3[%c0_5, %c0_6, %c0_7] : memref<2x16x16xf32, #tpu.memory_space<vmem>>, vector<1x16x16xf32>
    %9 = vector.shape_cast %8 : vector<1x16x16xf32> to vector<16x16xf32>
    %10 = arith.truncf %9 : vector<16x16xf32> to vector<16x16xbf16>
    %cst = arith.constant dense<0.000000e+00> : vector<16x16xf32>
    %11 = tpu.matmul %1, %10, %cst {dimension_numbers = #tpu.dot_dimension_numbers<[1], [0], [0], [1], [0, 0, 1, 1], [], []>} : vector<16x16xbf16>, vector<16x16xbf16>, vector<16x16xf32> -> vector<16x16xf32>
    %12 = arith.truncf %11 : vector<16x16xf32> to vector<16x16xbf16>
    %cst_8 = arith.constant dense<0.000000e+00> : vector<16x16xf32>
    %13 = tpu.matmul %12, %2, %cst_8 {dimension_numbers = #tpu.dot_dimension_numbers<[1], [0], [0], [1], [0, 0, 1, 1], [], []>} : vector<16x16xbf16>, vector<16x16xbf16>, vector<16x16xf32> -> vector<16x16xf32>
    %c1 = arith.constant 1 : index
    %c0_9 = arith.constant 0 : index
    %c0_10 = arith.constant 0 : index
    %14 = vector.load %arg3[%c1, %c0_9, %c0_10] : memref<2x16x16xf32, #tpu.memory_space<vmem>>, vector<1x16x16xf32>
    %15 = vector.shape_cast %14 : vector<1x16x16xf32> to vector<16x16xf32>
    %16 = arith.truncf %15 : vector<16x16xf32> to vector<16x16xbf16>
    %cst_11 = arith.constant dense<0.000000e+00> : vector<16x16xf32>
    %17 = tpu.matmul %1, %16, %cst_11 {dimension_numbers = #tpu.dot_dimension_numbers<[1], [0], [0], [1], [0, 0, 1, 1], [], []>} : vector<16x16xbf16>, vector<16x16xbf16>, vector<16x16xf32> -> vector<16x16xf32>
    %18 = arith.truncf %17 : vector<16x16xf32> to vector<16x16xbf16>
    %cst_12 = arith.constant dense<0.000000e+00> : vector<16x16xf32>
    %19 = tpu.matmul %18, %2, %cst_12 {dimension_numbers = #tpu.dot_dimension_numbers<[1], [0], [0], [1], [0, 0, 1, 1], [], []>} : vector<16x16xbf16>, vector<16x16xbf16>, vector<16x16xf32> -> vector<16x16xf32>
    %c0_13 = arith.constant 0 : index
    %c0_14 = arith.constant 0 : index
    %20 = memref.load %arg5[%c0_13, %c0_14] : memref<2x5xf32, #tpu.memory_space<smem>>
    %21 = vector.broadcast %20 : f32 to vector<16x16xf32>
    %22 = arith.mulf %13, %21 : vector<16x16xf32>
    %c1_15 = arith.constant 1 : index
    %c0_16 = arith.constant 0 : index
    %23 = memref.load %arg5[%c1_15, %c0_16] : memref<2x5xf32, #tpu.memory_space<smem>>
    %24 = vector.broadcast %23 : f32 to vector<16x16xf32>
    %25 = arith.mulf %19, %24 : vector<16x16xf32>
    %26 = arith.addf %22, %25 : vector<16x16xf32>
    %c0_17 = arith.constant 0 : index
    %c0_18 = arith.constant 0 : index
    %c0_19 = arith.constant 0 : index
    %27 = vector.load %arg7[%c0_17, %c0_18, %c0_19] : memref<5x16x16xf32, #tpu.memory_space<vmem>>, vector<1x16x16xf32>
    %28 = vector.shape_cast %27 : vector<1x16x16xf32> to vector<16x16xf32>
    %29 = vector.shape_cast %26 : vector<16x16xf32> to vector<1x16x16xf32>
    tpu.vector_store %arg7[%c0_17, %c0_18, %c0_19], %29 {strides = array<i32>} : memref<5x16x16xf32, #tpu.memory_space<vmem>>, vector<1x16x16xf32>,
    %c0_20 = arith.constant 0 : index
    %c1_21 = arith.constant 1 : index
    %30 = memref.load %arg5[%c0_20, %c1_21] : memref<2x5xf32, #tpu.memory_space<smem>>
    %31 = vector.broadcast %30 : f32 to vector<16x16xf32>
    %32 = arith.mulf %13, %31 : vector<16x16xf32>
    %c1_22 = arith.constant 1 : index
    %c1_23 = arith.constant 1 : index
    %33 = memref.load %arg5[%c1_22, %c1_23] : memref<2x5xf32, #tpu.memory_space<smem>>
    %34 = vector.broadcast %33 : f32 to vector<16x16xf32>
    %35 = arith.mulf %19, %34 : vector<16x16xf32>
    %36 = arith.addf %32, %35 : vector<16x16xf32>
    %c1_24 = arith.constant 1 : index
    %c0_25 = arith.constant 0 : index
    %c0_26 = arith.constant 0 : index
    %37 = vector.load %arg7[%c1_24, %c0_25, %c0_26] : memref<5x16x16xf32, #tpu.memory_space<vmem>>, vector<1x16x16xf32>
    %38 = vector.shape_cast %37 : vector<1x16x16xf32> to vector<16x16xf32>
    %39 = vector.shape_cast %36 : vector<16x16xf32> to vector<1x16x16xf32>
    tpu.vector_store %arg7[%c1_24, %c0_25, %c0_26], %39 {strides = array<i32>} : memref<5x16x16xf32, #tpu.memory_space<vmem>>, vector<1x16x16xf32>,
    %40 = arith.maximumf %26, %36 : vector<16x16xf32>
    %c0_27 = arith.constant 0 : index
    %c2 = arith.constant 2 : index
    %41 = memref.load %arg5[%c0_27, %c2] : memref<2x5xf32, #tpu.memory_space<smem>>
    %42 = vector.broadcast %41 : f32 to vector<16x16xf32>
    %43 = arith.mulf %13, %42 : vector<16x16xf32>
    %c1_28 = arith.constant 1 : index
    %c2_29 = arith.constant 2 : index
    %44 = memref.load %arg5[%c1_28, %c2_29] : memref<2x5xf32, #tpu.memory_space<smem>>
    %45 = vector.broadcast %44 : f32 to vector<16x16xf32>
    %46 = arith.mulf %19, %45 : vector<16x16xf32>
    %47 = arith.addf %43, %46 : vector<16x16xf32>
    %c2_30 = arith.constant 2 : index
    %c0_31 = arith.constant 0 : index
    %c0_32 = arith.constant 0 : index
    %48 = vector.load %arg7[%c2_30, %c0_31, %c0_32] : memref<5x16x16xf32, #tpu.memory_space<vmem>>, vector<1x16x16xf32>
    %49 = vector.shape_cast %48 : vector<1x16x16xf32> to vector<16x16xf32>
    %50 = vector.shape_cast %47 : vector<16x16xf32> to vector<1x16x16xf32>
    tpu.vector_store %arg7[%c2_30, %c0_31, %c0_32], %50 {strides = array<i32>} : memref<5x16x16xf32, #tpu.memory_space<vmem>>, vector<1x16x16xf32>,
    %51 = arith.maximumf %40, %47 : vector<16x16xf32>
    %c0_33 = arith.constant 0 : index
    %c3 = arith.constant 3 : index
    %52 = memref.load %arg5[%c0_33, %c3] : memref<2x5xf32, #tpu.memory_space<smem>>
    %53 = vector.broadcast %52 : f32 to vector<16x16xf32>
    %54 = arith.mulf %13, %53 : vector<16x16xf32>
    %c1_34 = arith.constant 1 : index
    %c3_35 = arith.constant 3 : index
    %55 = memref.load %arg5[%c1_34, %c3_35] : memref<2x5xf32, #tpu.memory_space<smem>>
    %56 = vector.broadcast %55 : f32 to vector<16x16xf32>
    %57 = arith.mulf %19, %56 : vector<16x16xf32>
    %58 = arith.addf %54, %57 : vector<16x16xf32>
    %c3_36 = arith.constant 3 : index
    %c0_37 = arith.constant 0 : index
    %c0_38 = arith.constant 0 : index
    %59 = vector.load %arg7[%c3_36, %c0_37, %c0_38] : memref<5x16x16xf32, #tpu.memory_space<vmem>>, vector<1x16x16xf32>
    %60 = vector.shape_cast %59 : vector<1x16x16xf32> to vector<16x16xf32>
    %61 = vector.shape_cast %58 : vector<16x16xf32> to vector<1x16x16xf32>
    tpu.vector_store %arg7[%c3_36, %c0_37, %c0_38], %61 {strides = array<i32>} : memref<5x16x16xf32, #tpu.memory_space<vmem>>, vector<1x16x16xf32>,
    %62 = arith.maximumf %51, %58 : vector<16x16xf32>
    %c0_39 = arith.constant 0 : index
    %c4 = arith.constant 4 : index
    %63 = memref.load %arg5[%c0_39, %c4] : memref<2x5xf32, #tpu.memory_space<smem>>
    %64 = vector.broadcast %63 : f32 to vector<16x16xf32>
    %65 = arith.mulf %13, %64 : vector<16x16xf32>
    %c1_40 = arith.constant 1 : index
    %c4_41 = arith.constant 4 : index
    %66 = memref.load %arg5[%c1_40, %c4_41] : memref<2x5xf32, #tpu.memory_space<smem>>
    %67 = vector.broadcast %66 : f32 to vector<16x16xf32>
    %68 = arith.mulf %19, %67 : vector<16x16xf32>
    %69 = arith.addf %65, %68 : vector<16x16xf32>
    %c4_42 = arith.constant 4 : index
    %c0_43 = arith.constant 0 : index
    %c0_44 = arith.constant 0 : index
    %70 = vector.load %arg7[%c4_42, %c0_43, %c0_44] : memref<5x16x16xf32, #tpu.memory_space<vmem>>, vector<1x16x16xf32>
    %71 = vector.shape_cast %70 : vector<1x16x16xf32> to vector<16x16xf32>
    %72 = vector.shape_cast %69 : vector<16x16xf32> to vector<1x16x16xf32>
    tpu.vector_store %arg7[%c4_42, %c0_43, %c0_44], %72 {strides = array<i32>} : memref<5x16x16xf32, #tpu.memory_space<vmem>>, vector<1x16x16xf32>,
    %73 = arith.maximumf %62, %69 : vector<16x16xf32>
    %cst_45 = arith.constant 0.000000e+00 : f32
    %74 = vector.broadcast %cst_45 : f32 to vector<16x16xf32>
    %cst_46 = arith.constant 0.000000e+00 : f32
    %75 = vector.broadcast %cst_46 : f32 to vector<16x16xf32>
    %cst_47 = arith.constant 0.000000e+00 : f32
    %76 = vector.broadcast %cst_47 : f32 to vector<16x16xf32>
    %cst_48 = arith.constant 0.000000e+00 : f32
    %77 = vector.broadcast %cst_48 : f32 to vector<16x16xf32>
    %c0_49 = arith.constant 0 : index
    %c0_50 = arith.constant 0 : index
    %c0_51 = arith.constant 0 : index
    %78 = vector.load %arg7[%c0_49, %c0_50, %c0_51] : memref<5x16x16xf32, #tpu.memory_space<vmem>>, vector<1x16x16xf32>
    %79 = vector.shape_cast %78 : vector<1x16x16xf32> to vector<16x16xf32>
    %80 = arith.subf %79, %73 : vector<16x16xf32>
    %81 = math.exp %80 : vector<16x16xf32>
    %82 = arith.addf %74, %81 : vector<16x16xf32>
    %c0_52 = arith.constant 0 : index
    %83 = memref.load %arg6[%c0_52] : memref<5xf32, #tpu.memory_space<smem>>
    %84 = vector.broadcast %83 : f32 to vector<16x16xf32>
    %85 = arith.mulf %81, %84 : vector<16x16xf32>
    %86 = arith.addf %75, %85 : vector<16x16xf32>
    %c0_i32_53 = arith.constant 0 : i32
    %87 = vector.broadcast %c0_i32_53 : i32 to vector<16x16xi32>
    %88 = arith.cmpi eq, %3, %87 : vector<16x16xi32>
    %89 = arith.select %88, %79, %76 : vector<16x16xi1>, vector<16x16xf32>
    %c0_54 = arith.constant 0 : index
    %90 = memref.load %arg6[%c0_54] : memref<5xf32, #tpu.memory_space<smem>>
    %91 = vector.broadcast %90 : f32 to vector<16x16xf32>
    %92 = arith.select %88, %91, %77 : vector<16x16xi1>, vector<16x16xf32>
    %c1_55 = arith.constant 1 : index
    %c0_56 = arith.constant 0 : index
    %c0_57 = arith.constant 0 : index
    %93 = vector.load %arg7[%c1_55, %c0_56, %c0_57] : memref<5x16x16xf32, #tpu.memory_space<vmem>>, vector<1x16x16xf32>
    %94 = vector.shape_cast %93 : vector<1x16x16xf32> to vector<16x16xf32>
    %95 = arith.subf %94, %73 : vector<16x16xf32>
    %96 = math.exp %95 : vector<16x16xf32>
    %97 = arith.addf %82, %96 : vector<16x16xf32>
    %c1_58 = arith.constant 1 : index
    %98 = memref.load %arg6[%c1_58] : memref<5xf32, #tpu.memory_space<smem>>
    %99 = vector.broadcast %98 : f32 to vector<16x16xf32>
    %100 = arith.mulf %96, %99 : vector<16x16xf32>
    %101 = arith.addf %86, %100 : vector<16x16xf32>
    %c1_i32 = arith.constant 1 : i32
    %102 = vector.broadcast %c1_i32 : i32 to vector<16x16xi32>
    %103 = arith.cmpi eq, %3, %102 : vector<16x16xi32>
    %104 = arith.select %103, %94, %89 : vector<16x16xi1>, vector<16x16xf32>
    %c1_59 = arith.constant 1 : index
    %105 = memref.load %arg6[%c1_59] : memref<5xf32, #tpu.memory_space<smem>>
    %106 = vector.broadcast %105 : f32 to vector<16x16xf32>
    %107 = arith.select %103, %106, %92 : vector<16x16xi1>, vector<16x16xf32>
    %c2_60 = arith.constant 2 : index
    %c0_61 = arith.constant 0 : index
    %c0_62 = arith.constant 0 : index
    %108 = vector.load %arg7[%c2_60, %c0_61, %c0_62] : memref<5x16x16xf32, #tpu.memory_space<vmem>>, vector<1x16x16xf32>
    %109 = vector.shape_cast %108 : vector<1x16x16xf32> to vector<16x16xf32>
    %110 = arith.subf %109, %73 : vector<16x16xf32>
    %111 = math.exp %110 : vector<16x16xf32>
    %112 = arith.addf %97, %111 : vector<16x16xf32>
    %c2_63 = arith.constant 2 : index
    %113 = memref.load %arg6[%c2_63] : memref<5xf32, #tpu.memory_space<smem>>
    %114 = vector.broadcast %113 : f32 to vector<16x16xf32>
    %115 = arith.mulf %111, %114 : vector<16x16xf32>
    %116 = arith.addf %101, %115 : vector<16x16xf32>
    %c2_i32 = arith.constant 2 : i32
    %117 = vector.broadcast %c2_i32 : i32 to vector<16x16xi32>
    %118 = arith.cmpi eq, %3, %117 : vector<16x16xi32>
    %119 = arith.select %118, %109, %104 : vector<16x16xi1>, vector<16x16xf32>
    %c2_64 = arith.constant 2 : index
    %120 = memref.load %arg6[%c2_64] : memref<5xf32, #tpu.memory_space<smem>>
    %121 = vector.broadcast %120 : f32 to vector<16x16xf32>
    %122 = arith.select %118, %121, %107 : vector<16x16xi1>, vector<16x16xf32>
    %c3_65 = arith.constant 3 : index
    %c0_66 = arith.constant 0 : index
    %c0_67 = arith.constant 0 : index
    %123 = vector.load %arg7[%c3_65, %c0_66, %c0_67] : memref<5x16x16xf32, #tpu.memory_space<vmem>>, vector<1x16x16xf32>
    %124 = vector.shape_cast %123 : vector<1x16x16xf32> to vector<16x16xf32>
    %125 = arith.subf %124, %73 : vector<16x16xf32>
    %126 = math.exp %125 : vector<16x16xf32>
    %127 = arith.addf %112, %126 : vector<16x16xf32>
    %c3_68 = arith.constant 3 : index
    %128 = memref.load %arg6[%c3_68] : memref<5xf32, #tpu.memory_space<smem>>
    %129 = vector.broadcast %128 : f32 to vector<16x16xf32>
    %130 = arith.mulf %126, %129 : vector<16x16xf32>
    %131 = arith.addf %116, %130 : vector<16x16xf32>
    %c3_i32 = arith.constant 3 : i32
    %132 = vector.broadcast %c3_i32 : i32 to vector<16x16xi32>
    %133 = arith.cmpi eq, %3, %132 : vector<16x16xi32>
    %134 = arith.select %133, %124, %119 : vector<16x16xi1>, vector<16x16xf32>
    %c3_69 = arith.constant 3 : index
    %135 = memref.load %arg6[%c3_69] : memref<5xf32, #tpu.memory_space<smem>>
    %136 = vector.broadcast %135 : f32 to vector<16x16xf32>
    %137 = arith.select %133, %136, %122 : vector<16x16xi1>, vector<16x16xf32>
    %c4_70 = arith.constant 4 : index
    %c0_71 = arith.constant 0 : index
    %c0_72 = arith.constant 0 : index
    %138 = vector.load %arg7[%c4_70, %c0_71, %c0_72] : memref<5x16x16xf32, #tpu.memory_space<vmem>>, vector<1x16x16xf32>
    %139 = vector.shape_cast %138 : vector<1x16x16xf32> to vector<16x16xf32>
    %140 = arith.subf %139, %73 : vector<16x16xf32>
    %141 = math.exp %140 : vector<16x16xf32>
    %142 = arith.addf %127, %141 : vector<16x16xf32>
    %c4_73 = arith.constant 4 : index
    %143 = memref.load %arg6[%c4_73] : memref<5xf32, #tpu.memory_space<smem>>
    %144 = vector.broadcast %143 : f32 to vector<16x16xf32>
    %145 = arith.mulf %141, %144 : vector<16x16xf32>
    %146 = arith.addf %131, %145 : vector<16x16xf32>
    %c4_i32 = arith.constant 4 : i32
    %147 = vector.broadcast %c4_i32 : i32 to vector<16x16xi32>
    %148 = arith.cmpi eq, %3, %147 : vector<16x16xi32>
    %149 = arith.select %148, %139, %134 : vector<16x16xi1>, vector<16x16xf32>
    %c4_74 = arith.constant 4 : index
    %150 = memref.load %arg6[%c4_74] : memref<5xf32, #tpu.memory_space<smem>>
    %151 = vector.broadcast %150 : f32 to vector<16x16xf32>
    %152 = arith.select %148, %151, %137 : vector<16x16xi1>, vector<16x16xf32>
    %153 = arith.divf %146, %142 : vector<16x16xf32>
    %154 = math.log %142 : vector<16x16xf32>
    %155 = arith.addf %73, %154 : vector<16x16xf32>
    %156 = arith.subf %155, %149 : vector<16x16xf32>
    %157 = arith.subf %153, %152 : vector<16x16xf32>
    %158 = arith.mulf %156, %7 : vector<16x16xf32>
    %159 = vector.shape_cast %158 : vector<16x16xf32> to vector<1x16x16xf32>
    %cst_75 = arith.constant dense<0.000000e+00> : vector<1xf32>
    %160 = vector.multi_reduction <add>, %159, %cst_75 [1, 2] : vector<1x16x16xf32> to vector<1xf32>
    %161 = vector.shape_cast %160 : vector<1xf32> to vector<1x1x1xf32>
    %162 = vector.extract %161[0, 0, 0] : f32 from vector<1x1x1xf32>
    %163 = arith.mulf %157, %157 : vector<16x16xf32>
    %164 = arith.mulf %163, %7 : vector<16x16xf32>
    %165 = vector.shape_cast %164 : vector<16x16xf32> to vector<1x16x16xf32>
    %cst_76 = arith.constant dense<0.000000e+00> : vector<1xf32>
    %166 = vector.multi_reduction <add>, %165, %cst_76 [1, 2] : vector<1x16x16xf32> to vector<1xf32>
    %167 = vector.shape_cast %166 : vector<1xf32> to vector<1x1x1xf32>
    %168 = vector.extract %167[0, 0, 0] : f32 from vector<1x1x1xf32>
    %169 = tpu.iota {dimensions = array<i32: 1>} : vector<1x128xi32>
    %c0_i32_77 = arith.constant 0 : i32
    %170 = vector.broadcast %c0_i32_77 : i32 to vector<1x128xi32>
    %171 = arith.cmpi eq, %169, %170 : vector<1x128xi32>
    %172 = arith.extui %171 : vector<1x128xi1> to vector<1x128xi32>
    %173 = arith.sitofp %172 : vector<1x128xi32> to vector<1x128xf32>
    %174 = vector.broadcast %162 : f32 to vector<1x128xf32>
    %175 = arith.mulf %174, %173 : vector<1x128xf32>
    %c1_i32_78 = arith.constant 1 : i32
    %176 = vector.broadcast %c1_i32_78 : i32 to vector<1x128xi32>
    %177 = arith.cmpi eq, %169, %176 : vector<1x128xi32>
    %178 = arith.extui %177 : vector<1x128xi1> to vector<1x128xi32>
    %179 = arith.sitofp %178 : vector<1x128xi32> to vector<1x128xf32>
    %180 = vector.broadcast %168 : f32 to vector<1x128xf32>
    %181 = arith.mulf %180, %179 : vector<1x128xf32>
    %182 = arith.addf %175, %181 : vector<1x128xf32>
    %c0_79 = arith.constant 0 : index
    %c0_80 = arith.constant 0 : index
    %c0_81 = arith.constant 0 : index
    %183 = vector.load %arg8[%c0_79, %c0_80, %c0_81] : memref<1x1x128xf32, #tpu.memory_space<vmem>>, vector<1x1x128xf32>
    %184 = vector.shape_cast %183 : vector<1x1x128xf32> to vector<1x128xf32>
    %185 = vector.shape_cast %182 : vector<1x128xf32> to vector<1x1x128xf32>
    tpu.vector_store %arg8[%c0_79, %c0_80, %c0_81], %185 {strides = array<i32>} : memref<1x1x128xf32, #tpu.memory_space<vmem>>, vector<1x1x128xf32>,
    return
  }
  func.func @transform_0(%arg0: i32) -> (i32, i32) {
    %c0_i32 = arith.constant 0 : i32
    %c0_i32_0 = arith.constant 0 : i32
    return %arg0, %c0_i32 : i32, i32
  }
  func.func @transform_1(%arg0: i32) -> (i32, i32) {
    %c0_i32 = arith.constant 0 : i32
    %c0_i32_0 = arith.constant 0 : i32
    %c0_i32_1 = arith.constant 0 : i32
    return %c0_i32, %c0_i32_0 : i32, i32
  }
  func.func @transform_2(%arg0: i32) -> (i32, i32, i32) {
    %c0_i32 = arith.constant 0 : i32
    %c0_i32_0 = arith.constant 0 : i32
    %c0_i32_1 = arith.constant 0 : i32
    %c0_i32_2 = arith.constant 0 : i32
    return %c0_i32, %c0_i32_0, %c0_i32_1 : i32, i32, i32
  }
  func.func @transform_3(%arg0: i32) -> (i32, i32) {
    %c0_i32 = arith.constant 0 : i32
    %c0_i32_0 = arith.constant 0 : i32
    return %arg0, %c0_i32 : i32, i32
  }
  func.func @transform_4(%arg0: i32) -> (i32, i32) {
    %c0_i32 = arith.constant 0 : i32
    %c0_i32_0 = arith.constant 0 : i32
    %c0_i32_1 = arith.constant 0 : i32
    return %c0_i32, %c0_i32_0 : i32, i32
  }
  func.func @transform_5(%arg0: i32) -> i32 {
    %c0_i32 = arith.constant 0 : i32
    %c0_i32_0 = arith.constant 0 : i32
    return %c0_i32 : i32
  }
  func.func @transform_6(%arg0: i32) -> (i32, i32, i32) {
    %c0_i32 = arith.constant 0 : i32
    %c0_i32_0 = arith.constant 0 : i32
    %c0_i32_1 = arith.constant 0 : i32
    return %c0_i32, %arg0, %c0_i32_0 : i32, i32, i32
  }
  func.func @transform_7(%arg0: i32) -> (i32, i32, i32) {
    %c0_i32 = arith.constant 0 : i32
    %c0_i32_0 = arith.constant 0 : i32
    %c0_i32_1 = arith.constant 0 : i32
    return %arg0, %c0_i32, %c0_i32_0 : i32, i32, i32
  }
}

module attributes {stable_mosaic.version = 11 : i64} {
  func.func @_linear_kernel(%arg0: i32, %arg1: memref<16x32xf32, #tpu.memory_space<vmem>>, %arg2: memref<32x16xf32, #tpu.memory_space<vmem>>, %arg3: memref<1x16xf32, #tpu.memory_space<vmem>>, %arg4: memref<16x16xf32, #tpu.memory_space<vmem>>) attributes {dimension_semantics = [#tpu.dimension_semantics<parallel>], iteration_bounds = array<i64: 1>, scalar_prefetch = 0 : i64, scratch_operands = 0 : i64, tpu.core_type = #tpu.core_type<tc>, window_params = [{transform_indices = @transform_0, window_bounds = array<i64: 16, 32>}, {pipeline_mode = #tpu.pipeline_mode<synchronous>, transform_indices = @transform_1, window_bounds = array<i64: 32, 16>}, {pipeline_mode = #tpu.pipeline_mode<synchronous>, transform_indices = @transform_2, window_bounds = array<i64: 1, 16>}, {transform_indices = @transform_3, window_bounds = array<i64: 16, 16>}]} {
    %c0 = arith.constant 0 : index
    %c0_0 = arith.constant 0 : index
    %0 = vector.load %arg1[%c0, %c0_0] : memref<16x32xf32, #tpu.memory_space<vmem>>, vector<16x32xf32>
    %c0_1 = arith.constant 0 : index
    %c0_2 = arith.constant 0 : index
    %1 = vector.load %arg2[%c0_1, %c0_2] : memref<32x16xf32, #tpu.memory_space<vmem>>, vector<32x16xf32>
    %cst = arith.constant dense<0.000000e+00> : vector<16x16xf32>
    %2 = tpu.matmul %0, %1, %cst {dimension_numbers = #tpu.dot_dimension_numbers<[1], [0], [0], [1], [0, 0, 1, 1], [], []>} : vector<16x32xf32>, vector<32x16xf32>, vector<16x16xf32> -> vector<16x16xf32>
    %c0_3 = arith.constant 0 : index
    %c0_4 = arith.constant 0 : index
    %3 = vector.load %arg3[%c0_3, %c0_4] : memref<1x16xf32, #tpu.memory_space<vmem>>, vector<1x16xf32>
    %4 = vector.broadcast %3 : vector<1x16xf32> to vector<16x16xf32>
    %5 = arith.addf %2, %4 : vector<16x16xf32>
    %c0_5 = arith.constant 0 : index
    %c0_6 = arith.constant 0 : index
    %6 = vector.load %arg4[%c0_5, %c0_6] : memref<16x16xf32, #tpu.memory_space<vmem>>, vector<16x16xf32>
    tpu.vector_store %arg4[%c0_5, %c0_6], %5 {strides = array<i32>} : memref<16x16xf32, #tpu.memory_space<vmem>>, vector<16x16xf32>,
    return
  }
  func.func @transform_0(%arg0: i32) -> (i32, i32) {
    %c0_i32 = arith.constant 0 : i32
    %c0_i32_0 = arith.constant 0 : i32
    return %arg0, %c0_i32 : i32, i32
  }
  func.func @transform_1(%arg0: i32) -> (i32, i32) {
    %c0_i32 = arith.constant 0 : i32
    %c0_i32_0 = arith.constant 0 : i32
    %c0_i32_1 = arith.constant 0 : i32
    return %c0_i32, %c0_i32_0 : i32, i32
  }
  func.func @transform_2(%arg0: i32) -> (i32, i32) {
    %c0_i32 = arith.constant 0 : i32
    %c0_i32_0 = arith.constant 0 : i32
    %c0_i32_1 = arith.constant 0 : i32
    return %c0_i32, %c0_i32_0 : i32, i32
  }
  func.func @transform_3(%arg0: i32) -> (i32, i32) {
    %c0_i32 = arith.constant 0 : i32
    %c0_i32_0 = arith.constant 0 : i32
    return %arg0, %c0_i32 : i32, i32
  }
}

</mosaic_0001>

<llo_original>
// kernel: amg_forward.12
$region0: #{amg_forward.12}
  #allocation0 [shape = 'u32[]', space=smem, size = 0x4, offset = 0x4, fixed_abs, tag = 'smem constant byte address 0x4 - core index']
  #allocation1 [shape = 'u32[72,128]{1,0:T(1,128)}', space=vmem, size = 0x9000, scoped, tag = 'internal scratch']
  #allocation2 [shape = 'f32[1,16]{1,0:T(1,128)}', space=vmem, size = 0x200, scoped, tag = 'scratch operand']
  %s0 = inlined_call_operand.hbm [shape: s32[16,16], index: 0, kind: input, shape index: {}]
  %s1 = inlined_call_operand.vmem [shape: f32[5,16,1], index: 1, kind: output, shape index: {0}]
  %s2 = inlined_call_operand.vmem [shape: f32[5,1,16], index: 2, kind: output, shape index: {1}]
  %3 = xla_tuple %s1, %s2
  %s4 = sld [smem:[#allocation0]]
  $region57: #{amg_forward.12} parent=0
    _
  %s6 = ssub.s32 1, %s4
  %s7 = scalar_select 0, %s6, %s4
  $region1: #{amg_forward.12} parent=0
    #allocation3 [shape = 'u8[8192]{0}', space=vmem, size = 0x2000, scoped, tag = 'input window, operand 0, single buffered']
    #allocation4 [shape = 's32[2]{0}', space=sflag, size = 0x8, scoped, tag = 'scoped memory for amg_forward.12']
    %8 = vsyncpa [#allocation4], 0
    loop: start=0, step=1, limit=7
    $region2: #{amg_forward.12} parent=1 // loop_pre_header
      _
    $region3: #{amg_forward.12} parent=1 // loop_header
      %s10 = sphi 0, %s14
      %p11 = scmp.ge.s32.totalorder %s10, 7
      %s17 = sphi 0, %s29
      %s18 = sphi 0, %s25
      %s19 = sphi 0, %s17
      %s20 = sphi 0, %s18
      %s21 = sphi 0, %s19
      %s22 = sphi 0, %s20
      %s32 = sphi 0, %s34
      %s35 = sphi 0, %s32
      %s36 = sphi 0, %s35
      %s52 = sphi 0, %s36
      %s60 = sphi 0, %s62
      %s63 = sphi 0, %s60
      %s64 = sphi 0, %s63
      %s80 = sphi 0, %s64
      %s86 = sphi 0, %s88
      %s89 = sphi 0, %s86
      %s90 = sphi 0, %s89
      %s106 = sphi 0, %s90
    $region4: #{amg_forward.12} parent=1 // loop_header_branch
      %13 = sbr.rel (%p11) target = $region8
    $region5: #{amg_forward.12} parent=1 // loop_body
      %s15 = ssub.s32 %s10, 1
      %s16 = ssub.s32 %s10, 2
      %s23 = sadd.s32 1, %s18
      %p24 = scmp.ge.s32.totalorder %s23, 1
      %s25 = scalar_select %p24, 0, %s23
      %s26 = sadd.s32 1, %s17
      %s27 = scalar_select %p24, %s26, %s17
      %p28 = scmp.ge.s32.totalorder %s27, 5
      %s29 = scalar_select %p28, 0, %s27
      %s30 = ssub.s32 %s18, %s25
      %p31 = scmp.eq.s32.totalorder %s30, 0
      %s33 = sadd.s32 %s32, 1
      %s34 = scalar_select %p31, %s32, %s33
      %p37 = pneg %p31
      %p38 = scmp.eq.s32.totalorder %s10, 4
      %p39 = por %p37, %p38
      %p40 = scmp.ne.s32.totalorder %s32, %s35
      %p41 = scmp.eq.s32.totalorder %s10, 0
      %p42 = por %p40, %p41
      %p43 = scmp.ne.s32.totalorder %s32, %s35
      %p44 = scmp.eq.s32.totalorder %s15, 4
      %p45 = por %p43, %p44
      %p46 = scmp.ne.s32.totalorder %s35, %s36
      %p47 = scmp.eq.s32.totalorder %s15, 0
      %p48 = por %p46, %p47
      %p49 = scmp.ne.s32.totalorder %s35, %s36
      %p50 = scmp.eq.s32.totalorder %s16, 4
      %p51 = por %p49, %p50
      %p53 = scmp.ne.s32.totalorder %s36, %s52
      %p54 = scmp.eq.s32.totalorder %s16, 0
      %p55 = por %p53, %p54
      %s56 = ssub.s32 %s17, %s29
      %s57 = ssub.s32 %s18, %s25
      %s58 = sor.u32 %s56, %s57
      %p59 = scmp.eq.s32.totalorder %s58, 0
      %s61 = sadd.s32 %s60, 1
      %s62 = scalar_select %p59, %s60, %s61
      %p65 = pneg %p59
      %p66 = scmp.eq.s32.totalorder %s10, 4
      %p67 = por %p65, %p66
      %p68 = scmp.ne.s32.totalorder %s60, %s63
      %p69 = scmp.eq.s32.totalorder %s10, 0
      %p70 = por %p68, %p69
      %p71 = scmp.ne.s32.totalorder %s60, %s63
      %p72 = scmp.eq.s32.totalorder %s15, 4
      %p73 = por %p71, %p72
      %p74 = scmp.ne.s32.totalorder %s63, %s64
      %p75 = scmp.eq.s32.totalorder %s15, 0
      %p76 = por %p74, %p75
      %p77 = scmp.ne.s32.totalorder %s63, %s64
      %p78 = scmp.eq.s32.totalorder %s16, 4
      %p79 = por %p77, %p78
      %p81 = scmp.ne.s32.totalorder %s64, %s80
      %p82 = scmp.eq.s32.totalorder %s16, 0
      %p83 = por %p81, %p82
      %s84 = ssub.s32 %s17, %s29
      %p85 = scmp.eq.s32.totalorder %s84, 0
      %s87 = sadd.s32 %s86, 1
      %s88 = scalar_select %p85, %s86, %s87
      %p91 = pneg %p85
      %p92 = scmp.eq.s32.totalorder %s10, 4
      %p93 = por %p91, %p92
      %p94 = scmp.ne.s32.totalorder %s86, %s89
      %p95 = scmp.eq.s32.totalorder %s10, 0
      %p96 = por %p94, %p95
      %p97 = scmp.ne.s32.totalorder %s86, %s89
      %p98 = scmp.eq.s32.totalorder %s15, 4
      %p99 = por %p97, %p98
      %p100 = scmp.ne.s32.totalorder %s89, %s90
      %p101 = scmp.eq.s32.totalorder %s15, 0
      %p102 = por %p100, %p101
      %p103 = scmp.ne.s32.totalorder %s89, %s90
      %p104 = scmp.eq.s32.totalorder %s16, 4
      %p105 = por %p103, %p104
      %p107 = scmp.ne.s32.totalorder %s90, %s106
      %p108 = scmp.eq.s32.totalorder %s16, 0
      %p109 = por %p107, %p108
      %p110 = scmp.le.s32.totalorder 1, %s10
      %p111 = scmp.lt.s32.totalorder %s10, 6
      %p112 = pnand %p110, %p111
      %p113 = pneg %p112
      // Predicated region
      $region9: #{amg_forward.12} parent=5 // pred_check
        _
      $region10: #{amg_forward.12} parent=5 // pred_check_branch
        %115 = sbr.rel (%p112) target = $region12
      $region11: #{amg_forward.12} parent=5 // pred_region
        %s116 = ssub.s32 %s10, 1
        // Predicated region
        $region13: #{amg_forward.12} parent=11 // pred_check
          %p117 = pneg %p48
        $region14: #{amg_forward.12} parent=11 // pred_check_branch
          %119 = sbr.rel (%p117) target = $region16
        $region15: #{amg_forward.12} parent=11 // pred_region
          %s120 = smul.u32 2, %s20
          %122 = vsyncadd [#allocation4], 0
          %s123 = smul.addr %s120, 8
          %s124 = scalar_lea.hbm %s0, %s123
          %s125 = sshll.u32 %s124, 4
          %s126 = int_to_ptr.hbm [resolvable:$true] %s125
          %s127 = sshll.u32 [#allocation3], 4
          %s128 = int_to_ptr.vmem [resolvable:$true] %s127
          %133 = dma.hbm_to_vmem [thread:$0]  %s126, 256, %s128, [#allocation4], 128, 128, 8
        $region16: #{amg_forward.12} parent=11 // pred_fallthru
          _
      $region12: #{amg_forward.12} parent=5 // pred_fallthru
        _
      %p134 = scmp.lt.s32.totalorder %s10, 5
      // Predicated region
      $region17: #{amg_forward.12} parent=5 // pred_check
        %p135 = pneg %p134
      $region18: #{amg_forward.12} parent=5 // pred_check_branch
        %137 = sbr.rel (%p135) target = $region20
      $region19: #{amg_forward.12} parent=5 // pred_region
        _
      $region20: #{amg_forward.12} parent=5 // pred_fallthru
        _
      %p138 = scmp.le.s32.totalorder 1, %s10
      %p139 = scmp.lt.s32.totalorder %s10, 6
      %p140 = pnand %p138, %p139
      %p141 = pneg %p140
      // Predicated region
      $region21: #{amg_forward.12} parent=5 // pred_check
        _
      $region22: #{amg_forward.12} parent=5 // pred_check_branch
        %143 = sbr.rel (%p140) target = $region24
      $region23: #{amg_forward.12} parent=5 // pred_region
        %s144 = ssub.s32 %s10, 1
        // Predicated region
        $region25: #{amg_forward.12} parent=23 // pred_check
          %p145 = pneg %p48
        $region26: #{amg_forward.12} parent=23 // pred_check_branch
          %147 = sbr.rel (%p145) target = $region28
        $region27: #{amg_forward.12} parent=23 // pred_region
          %149 = dma.done [#allocation4], 256
        $region28: #{amg_forward.12} parent=23 // pred_fallthru
          _
        %p150 = pneg %p48
        %p151 = pneg %p45
        %p152 = pneg %p76
        %p153 = pneg %p73
        %s154 = smul.u32 2, %s20
        %p155 = scmp.lt.s32.totalorder %s19, 4
        %s156 = scalar_select %p155, %s19, 4
        %p157 = scmp.lt.s32.totalorder %s154, 1
        %s158 = scalar_select %p157, %s154, 1
        %s159 = smul.addr %s156, 2
        %s160 = sadd.s32 %s158, %s159
        %s161 = smul.addr %s160, 8
        %s162 = scalar_lea.vmem %s1, %s161
        %p163 = pneg %p102
        %p164 = pneg %p99
        %p165 = scmp.lt.s32.totalorder %s19, 4
        %s166 = scalar_select %p165, %s19, 4
        %s167 = scalar_lea.vmem %s2, %s166
        %s168 = smul.u32 2, %s20
        %s169 = smul.u32 2, %s20
        %p170 = scmp.lt.s32.totalorder %s19, 4
        %s171 = scalar_select %p170, %s19, 4
        %p172 = scmp.lt.s32.totalorder %s169, 1
        %s173 = scalar_select %p172, %s169, 1
        %s174 = smul.addr %s171, 2
        %s175 = sadd.s32 %s173, %s174
        %s176 = smul.addr %s175, 8
        %s177 = scalar_lea.vmem %s1, %s176
        %s178 = smul.u32 2, %s20
        %p179 = scmp.lt.s32.totalorder %s19, 4
        %s180 = scalar_select %p179, %s19, 4
        %s181 = scalar_lea.vmem %s2, %s180
        %p182 = scmp.eq.s32.totalorder %s20, 0
        // Predicated region
        $region29: #{amg_forward.12} parent=23 // pred_check
          %p183 = pneg %p182
        $region30: #{amg_forward.12} parent=23 // pred_check_branch
          %185 = sbr.rel (%p183) target = $region32
        $region31: #{amg_forward.12} parent=23 // pred_region
          %vm186 = vcmask 122880
          %187 = vst.msk [vmem:[#allocation2] sm:$0x1] %vm186, 0.0
        $region32: #{amg_forward.12} parent=23 // pred_fallthru
          _
        %v188 = vld [vmem:[#allocation3] sm:$0xff]
        %v189 = vld [vmem:[#allocation3 + $0x8] sm:$0xff]
        %v190 = vstv %s19
        %vm191 = vcmp.eq.s32.totalorder %v188, %v190
        %vm192 = vcmp.eq.s32.totalorder %v189, %v190
        %v193 = vsel %vm191, 1, 0
        %v194 = vsel %vm192, 1, 0
        %v195 = vcvt.s32.f32 %v193
        %v196 = vcvt.s32.f32 %v194
        %vm197 = vcmask 130048
        %v198 = vsel %vm197, %v195, 0.0
        %199 = vadd.xlane.f32.xlu0 %v198
        %v200 = vpop.xlane.xlu0 %199
        %v201 = vsel %vm197, %v196, 0.0
        %202 = vadd.xlane.f32.xlu0 %v201
        %v203 = vpop.xlane.xlu0 %202
        %v204 = vmax.f32 %v200, 1.0
        %v205 = vmax.f32 %v203, 1.0
        %v206 = vrsqrt.pop %v204
        %v207 = vmul.f32 %v206, %v204
        %v208 = vmul.f32 %v207, %v206
        %v209 = vmul.f32 0.5, %v208
        %v210 = vsub.f32 1.5, %v209
        %v211 = vmul.f32 %v206, %v210
        %vm212 = vweird.f32 %v204
        %vm213 = vweird.f32 %v206
        %vm214 = vmor %vm212, %vm213
        %v215 = vsel %vm214, %v206, %v211
        %v216 = vrsqrt.pop %v205
        %v217 = vmul.f32 %v216, %v205
        %v218 = vmul.f32 %v217, %v216
        %v219 = vmul.f32 0.5, %v218
        %v220 = vsub.f32 1.5, %v219
        %v221 = vmul.f32 %v216, %v220
        %vm222 = vweird.f32 %v205
        %vm223 = vweird.f32 %v216
        %vm224 = vmor %vm222, %vm223
        %v225 = vsel %vm224, %v216, %v221
        %vm226 = vcmask 7168
        %227 = vst.msk [vmem:[%s177] sm:$0xff] %vm226, %v215
        %228 = vst.msk [vmem:[%s177 + $0x8] sm:$0xff] %vm226, %v225
        %v229 = vld [vmem:[#allocation2] sm:$0x1]
        %v230 = vadd.f32 %v198, %v201
        %v231 = vrot.slane %v230, 4
        %v232 = vadd.f32 %v230, %v231
        %v233 = vrot.slane %v232, 2
        %v234 = vadd.f32 %v232, %v233
        %v235 = vrot.slane %v234, 1
        %v236 = vadd.f32 %v234, %v235
        %v237 = vadd.f32 %v229, %v236
        %vm238 = vcmask 122880
        %239 = vst.msk [vmem:[#allocation2] sm:$0x1] %vm238, %v237
        // Predicated region
        $region33: #{amg_forward.12} parent=23 // pred_check
          %p240 = pneg %p182
        $region34: #{amg_forward.12} parent=23 // pred_check_branch
          %242 = sbr.rel (%p240) target = $region36
        $region35: #{amg_forward.12} parent=23 // pred_region
          %v243 = vld [vmem:[#allocation2] sm:$0x1]
          %v244 = vmax.f32 %v243, 1.0
          %v245 = vrsqrt.pop %v244
          %v246 = vmul.f32 %v245, %v244
          %v247 = vmul.f32 %v246, %v245
          %v248 = vmul.f32 0.5, %v247
          %v249 = vsub.f32 1.5, %v248
          %v250 = vmul.f32 %v245, %v249
          %vm251 = vweird.f32 %v244
          %vm252 = vweird.f32 %v245
          %vm253 = vmor %vm251, %vm252
          %v254 = vsel %vm253, %v245, %v250
          %255 = vst.msk [vmem:[%s181] sm:$0x1] %vm238, %v254
        $region36: #{amg_forward.12} parent=23 // pred_fallthru
          _
        %s256 = smul.u32 2, %s20
        %p257 = scmp.lt.s32.totalorder %s19, 4
        %s258 = scalar_select %p257, %s19, 4
        %p259 = scmp.lt.s32.totalorder %s256, 1
        %s260 = scalar_select %p259, %s256, 1
        %s261 = smul.addr %s258, 2
        %s262 = sadd.s32 %s260, %s261
        %s263 = smul.addr %s262, 8
        %s264 = scalar_lea.vmem %s1, %s263
        %p265 = scmp.lt.s32.totalorder %s19, 4
        %s266 = scalar_select %p265, %s19, 4
        %s267 = scalar_lea.vmem %s2, %s266
        // Predicated region
        $region37: #{amg_forward.12} parent=23 // pred_check
          %p268 = pneg %p73
        $region38: #{amg_forward.12} parent=23 // pred_check_branch
          %270 = sbr.rel (%p268) target = $region40
        $region39: #{amg_forward.12} parent=23 // pred_region
          %s271 = smul.u32 2, %s20
        $region40: #{amg_forward.12} parent=23 // pred_fallthru
          _
        // Predicated region
        $region41: #{amg_forward.12} parent=23 // pred_check
          %p272 = pneg %p99
        $region42: #{amg_forward.12} parent=23 // pred_check_branch
          %274 = sbr.rel (%p272) target = $region44
        $region43: #{amg_forward.12} parent=23 // pred_region
          _
        $region44: #{amg_forward.12} parent=23 // pred_fallthru
          _
      $region24: #{amg_forward.12} parent=5 // pred_fallthru
        _
      %p275 = scmp.le.s32.totalorder 2, %s10
      // Predicated region
      $region45: #{amg_forward.12} parent=5 // pred_check
        %p276 = pneg %p275
      $region46: #{amg_forward.12} parent=5 // pred_check_branch
        %278 = sbr.rel (%p276) target = $region48
      $region47: #{amg_forward.12} parent=5 // pred_region
        %s279 = ssub.s32 %s10, 2
        // Predicated region
        $region49: #{amg_forward.12} parent=47 // pred_check
          %p280 = pneg %p79
        $region50: #{amg_forward.12} parent=47 // pred_check_branch
          %282 = sbr.rel (%p280) target = $region52
        $region51: #{amg_forward.12} parent=47 // pred_region
          %s283 = smul.u32 2, %s22
          %p284 = scmp.lt.s32.totalorder %s21, 4
          %s285 = scalar_select %p284, %s21, 4
          %p286 = scmp.lt.s32.totalorder %s283, 1
          %s287 = scalar_select %p286, %s283, 1
          %s288 = smul.addr %s285, 2
          %s289 = sadd.s32 %s287, %s288
          %s290 = smul.addr %s289, 8
          %s291 = scalar_lea.vmem %s1, %s290
        $region52: #{amg_forward.12} parent=47 // pred_fallthru
          _
        // Predicated region
        $region53: #{amg_forward.12} parent=47 // pred_check
          %p292 = pneg %p105
        $region54: #{amg_forward.12} parent=47 // pred_check_branch
          %294 = sbr.rel (%p292) target = $region56
        $region55: #{amg_forward.12} parent=47 // pred_region
          %p295 = scmp.lt.s32.totalorder %s21, 4
          %s296 = scalar_select %p295, %s21, 4
          %s297 = scalar_lea.vmem %s2, %s296
        $region56: #{amg_forward.12} parent=47 // pred_fallthru
          _
      $region48: #{amg_forward.12} parent=5 // pred_fallthru
        _
    $region6: #{amg_forward.12} parent=1 // loop_footer
      %s14 = sadd.s32 1, %s10
    $region7: #{amg_forward.12} parent=1 // loop_footer_branch
      %9 = sbr.rel target = $region3
    $region8: #{amg_forward.12} parent=1 // loop_exit
      _
    %298 = vsyncpa [#allocation4], 1
    %s299 = scalar_lea.sflag [#allocation4], 1
    %300 = vsyncpa %s299, 1

// kernel: amg_forward.10
$region0: #{amg_forward.10}
  #allocation0 [shape = 'u32[]', space=smem, size = 0x4, offset = 0x4, fixed_abs, tag = 'smem constant byte address 0x4 - core index']
  #allocation1 [shape = 'u32[72,128]{1,0:T(1,128)}', space=vmem, size = 0x9000, scoped, tag = 'internal scratch']
  %s0 = inlined_call_operand.vmem [shape: f32[16,8], index: 0, kind: input, shape index: {}]
  %s1 = inlined_call_operand.vmem [shape: f32[16,8], index: 1, kind: input, shape index: {}]
  %s2 = inlined_call_operand.vmem [shape: f32[8,32], index: 2, kind: input, shape index: {}]
  %s3 = inlined_call_operand.vmem [shape: f32[8,32], index: 3, kind: input, shape index: {}]
  %s4 = inlined_call_operand.vmem [shape: f32[1,32], index: 4, kind: input, shape index: {}]
  %s5 = inlined_call_operand.vmem [shape: f32[16,32], index: 5, kind: output, shape index: {}]
  %s6 = sld [smem:[#allocation0]]
  $region30: #{amg_forward.10} parent=0
    _
  %s8 = ssub.s32 1, %s6
  %s9 = scalar_select 0, %s8, %s6
  // Predicated region
  $region2: #{amg_forward.10} parent=0 // pred_check
    _
  $region3: #{amg_forward.10} parent=0 // pred_check_branch
    %11 = sbr.rel (0) target = $region5
  $region4: #{amg_forward.10} parent=0 // pred_region
    _
  $region5: #{amg_forward.10} parent=0 // pred_fallthru
    _
  // Predicated region
  $region6: #{amg_forward.10} parent=0 // pred_check
    _
  $region7: #{amg_forward.10} parent=0 // pred_check_branch
    %13 = sbr.rel (0) target = $region9
  $region8: #{amg_forward.10} parent=0 // pred_region
    _
  $region9: #{amg_forward.10} parent=0 // pred_fallthru
    _
  // Predicated region
  $region10: #{amg_forward.10} parent=0 // pred_check
    _
  $region11: #{amg_forward.10} parent=0 // pred_check_branch
    %15 = sbr.rel (0) target = $region13
  $region12: #{amg_forward.10} parent=0 // pred_region
    _
  $region13: #{amg_forward.10} parent=0 // pred_fallthru
    _
  // Predicated region
  $region14: #{amg_forward.10} parent=0 // pred_check
    _
  $region15: #{amg_forward.10} parent=0 // pred_check_branch
    %17 = sbr.rel (0) target = $region17
  $region16: #{amg_forward.10} parent=0 // pred_region
    _
  $region17: #{amg_forward.10} parent=0 // pred_fallthru
    _
  // Predicated region
  $region18: #{amg_forward.10} parent=0 // pred_check
    _
  $region19: #{amg_forward.10} parent=0 // pred_check_branch
    %19 = sbr.rel (0) target = $region21
  $region20: #{amg_forward.10} parent=0 // pred_region
    _
  $region21: #{amg_forward.10} parent=0 // pred_fallthru
    _
  %v20 = vld [vmem:[%s0] sm:$0xff]
  %v21 = vld [vmem:[%s0 + $0x8] sm:$0xff]
  %v22 = vld [vmem:[%s2] sm:$0xff]
  %v23 = vld [vmem:[%s1] sm:$0xff]
  %v24 = vld [vmem:[%s1 + $0x8] sm:$0xff]
  %v25 = vld [vmem:[%s3] sm:$0xff]
  %vm26 = vcmask 64512
  %v28 = vsel %vm26, %v23, 0
  %v31 = vsel %vm26, %v24, 0
  %33 = vmatpush.msra.mxu0 0.0
  %34 = vmatpush.msra.mxu0 0.0
  %35 = vmatpush.msra.mxu0 0.0
  %36 = vmatpush.msra.mxu0 0.0
  %37 = vmatpush.msra.mxu0 0.0
  %38 = vmatpush.msra.mxu0 0.0
  %39 = vmatpush.msra.mxu0 0.0
  %40 = vmatpush.msra.mxu0 0.0
  %41 = vmatpush.msra.mxu0 0.0
  %42 = vmatpush.msra.mxu0 0.0
  %43 = vmatpush.msra.mxu0 0.0
  %44 = vmatpush.msra.mxu0 0.0
  %45 = vmatpush.msra.mxu0 0.0
  %46 = vmatpush.msra.mxu0 0.0
  %47 = vmatpush.msra.mxu0 0.0
  %48 = vmatpush.msra.mxu0 %v25
  %49 = vmatmul.f32.gmra.mxu0 %v28
  %v50 = vpop.f32.mrf.mxu0
  %v51 = vadd.f32 0.0, %v50
  %52 = vmatmul.f32.gmra.mxu0 %v31
  %v53 = vpop.f32.mrf.mxu0
  %v54 = vadd.f32 0.0, %v53
  %55 = vdwg.mxu0
  %v57 = vsel %vm26, %v20, 0
  %v60 = vsel %vm26, %v21, 0
  %62 = vmatpush.msra.mxu0 0.0
  %63 = vmatpush.msra.mxu0 0.0
  %64 = vmatpush.msra.mxu0 0.0
  %65 = vmatpush.msra.mxu0 0.0
  %66 = vmatpush.msra.mxu0 0.0
  %67 = vmatpush.msra.mxu0 0.0
  %68 = vmatpush.msra.mxu0 0.0
  %69 = vmatpush.msra.mxu0 0.0
  %70 = vmatpush.msra.mxu0 0.0
  %71 = vmatpush.msra.mxu0 0.0
  %72 = vmatpush.msra.mxu0 0.0
  %73 = vmatpush.msra.mxu0 0.0
  %74 = vmatpush.msra.mxu0 0.0
  %75 = vmatpush.msra.mxu0 0.0
  %76 = vmatpush.msra.mxu0 0.0
  %77 = vmatpush.msra.mxu0 %v22
  %78 = vmatmul.f32.gmra.mxu0 %v57
  %v79 = vpop.f32.mrf.mxu0
  %v80 = vadd.f32 %v51, %v79
  %81 = vmatmul.f32.gmra.mxu0 %v60
  %v82 = vpop.f32.mrf.mxu0
  %v83 = vadd.f32 %v54, %v82
  %84 = vdwg.mxu0
  %v85 = vld [vmem:[%s4] sm:$0x1]
  %v87 = vperm.slane %v85, 0
  %v89 = vadd.f32 %v80, %v87
  %v90 = vadd.f32 %v83, %v87
  %v91 = vmax.f32 %v89, 0.0
  %v92 = vmax.f32 %v90, 0.0
  %vm93 = vcmask 261120
  %94 = vst.msk [vmem:[%s5] sm:$0xff] %vm93, %v91
  %95 = vst.msk [vmem:[%s5 + $0x8] sm:$0xff] %vm93, %v92
  // Predicated region
  $region22: #{amg_forward.10} parent=0 // pred_check
    _
  $region23: #{amg_forward.10} parent=0 // pred_check_branch
    %97 = sbr.rel (0) target = $region25
  $region24: #{amg_forward.10} parent=0 // pred_region
    _
  $region25: #{amg_forward.10} parent=0 // pred_fallthru
    _
  // Predicated region
  $region26: #{amg_forward.10} parent=0 // pred_check
    _
  $region27: #{amg_forward.10} parent=0 // pred_check_branch
    %99 = sbr.rel (0) target = $region29
  $region28: #{amg_forward.10} parent=0 // pred_region
    _
  $region29: #{amg_forward.10} parent=0 // pred_fallthru
    _

// kernel: amg_forward.14
$region0: #{amg_forward.14}
  #allocation0 [shape = 'u32[]', space=smem, size = 0x4, offset = 0x4, fixed_abs, tag = 'smem constant byte address 0x4 - core index']
  #allocation1 [shape = 'u32[72,128]{1,0:T(1,128)}', space=vmem, size = 0x9000, scoped, tag = 'internal scratch']
  %s0 = inlined_call_operand.vmem [shape: f32[16,32], index: 0, kind: input, shape index: {}]
  %s1 = inlined_call_operand.vmem [shape: f32[5,16,1], index: 1, kind: input, shape index: {}]
  %s2 = inlined_call_operand.vmem [shape: f32[5,32,32], index: 2, kind: input, shape index: {}]
  %s3 = inlined_call_operand.vmem [shape: bf16[5,16,32], index: 3, kind: output, shape index: {}]
  %s4 = sld [smem:[#allocation0]]
  $region45: #{amg_forward.14} parent=0
    _
  %s6 = ssub.s32 1, %s4
  %s7 = scalar_select 0, %s6, %s4
  loop: start=0, step=1, limit=7
  $region2: #{amg_forward.14} parent=0 // loop_pre_header
    _
  $region3: #{amg_forward.14} parent=0 // loop_header
    %s9 = sphi 0, %s13
    %p10 = scmp.ge.s32.totalorder %s9, 7
    %s17 = sphi 0, %s17
    %s19 = sphi 0, %s17
    %s20 = sphi 0, %s19
    %s34 = sphi 0, %s20
    %s40 = sphi 0, %s42
    %s43 = sphi 0, %s40
    %s44 = sphi 0, %s43
    %s60 = sphi 0, %s44
    %s66 = sphi 0, %s68
    %s69 = sphi 0, %s66
    %s70 = sphi 0, %s69
    %s86 = sphi 0, %s70
    %s92 = sphi 0, %s94
    %s95 = sphi 0, %s92
    %s96 = sphi 0, %s95
    %s112 = sphi 0, %s96
  $region4: #{amg_forward.14} parent=0 // loop_header_branch
    %12 = sbr.rel (%p10) target = $region8
  $region5: #{amg_forward.14} parent=0 // loop_body
    %s14 = ssub.s32 %s9, 1
    %s15 = ssub.s32 %s9, 2
    %s16 = sadd.s32 %s9, 1
    %s18 = sadd.s32 %s17, 1
    %p21 = scmp.eq.s32.totalorder %s9, 4
    %p22 = scmp.ne.s32.totalorder %s17, %s19
    %p23 = scmp.eq.s32.totalorder %s9, 0
    %p24 = por %p22, %p23
    %p25 = scmp.ne.s32.totalorder %s17, %s19
    %p26 = scmp.eq.s32.totalorder %s14, 4
    %p27 = por %p25, %p26
    %p28 = scmp.ne.s32.totalorder %s19, %s20
    %p29 = scmp.eq.s32.totalorder %s14, 0
    %p30 = por %p28, %p29
    %p31 = scmp.ne.s32.totalorder %s19, %s20
    %p32 = scmp.eq.s32.totalorder %s15, 4
    %p33 = por %p31, %p32
    %p35 = scmp.ne.s32.totalorder %s20, %s34
    %p36 = scmp.eq.s32.totalorder %s15, 0
    %p37 = por %p35, %p36
    %s38 = ssub.s32 %s9, %s16
    %p39 = scmp.eq.s32.totalorder %s38, 0
    %s41 = sadd.s32 %s40, 1
    %s42 = scalar_select %p39, %s40, %s41
    %p45 = pneg %p39
    %p46 = scmp.eq.s32.totalorder %s9, 4
    %p47 = por %p45, %p46
    %p48 = scmp.ne.s32.totalorder %s40, %s43
    %p49 = scmp.eq.s32.totalorder %s9, 0
    %p50 = por %p48, %p49
    %p51 = scmp.ne.s32.totalorder %s40, %s43
    %p52 = scmp.eq.s32.totalorder %s14, 4
    %p53 = por %p51, %p52
    %p54 = scmp.ne.s32.totalorder %s43, %s44
    %p55 = scmp.eq.s32.totalorder %s14, 0
    %p56 = por %p54, %p55
    %p57 = scmp.ne.s32.totalorder %s43, %s44
    %p58 = scmp.eq.s32.totalorder %s15, 4
    %p59 = por %p57, %p58
    %p61 = scmp.ne.s32.totalorder %s44, %s60
    %p62 = scmp.eq.s32.totalorder %s15, 0
    %p63 = por %p61, %p62
    %s64 = ssub.s32 %s9, %s16
    %p65 = scmp.eq.s32.totalorder %s64, 0
    %s67 = sadd.s32 %s66, 1
    %s68 = scalar_select %p65, %s66, %s67
    %p71 = pneg %p65
    %p72 = scmp.eq.s32.totalorder %s9, 4
    %p73 = por %p71, %p72
    %p74 = scmp.ne.s32.totalorder %s66, %s69
    %p75 = scmp.eq.s32.totalorder %s9, 0
    %p76 = por %p74, %p75
    %p77 = scmp.ne.s32.totalorder %s66, %s69
    %p78 = scmp.eq.s32.totalorder %s14, 4
    %p79 = por %p77, %p78
    %p80 = scmp.ne.s32.totalorder %s69, %s70
    %p81 = scmp.eq.s32.totalorder %s14, 0
    %p82 = por %p80, %p81
    %p83 = scmp.ne.s32.totalorder %s69, %s70
    %p84 = scmp.eq.s32.totalorder %s15, 4
    %p85 = por %p83, %p84
    %p87 = scmp.ne.s32.totalorder %s70, %s86
    %p88 = scmp.eq.s32.totalorder %s15, 0
    %p89 = por %p87, %p88
    %s90 = ssub.s32 %s9, %s16
    %p91 = scmp.eq.s32.totalorder %s90, 0
    %s93 = sadd.s32 %s92, 1
    %s94 = scalar_select %p91, %s92, %s93
    %p97 = pneg %p91
    %p98 = scmp.eq.s32.totalorder %s9, 4
    %p99 = por %p97, %p98
    %p100 = scmp.ne.s32.totalorder %s92, %s95
    %p101 = scmp.eq.s32.totalorder %s9, 0
    %p102 = por %p100, %p101
    %p103 = scmp.ne.s32.totalorder %s92, %s95
    %p104 = scmp.eq.s32.totalorder %s14, 4
    %p105 = por %p103, %p104
    %p106 = scmp.ne.s32.totalorder %s95, %s96
    %p107 = scmp.eq.s32.totalorder %s14, 0
    %p108 = por %p106, %p107
    %p109 = scmp.ne.s32.totalorder %s95, %s96
    %p110 = scmp.eq.s32.totalorder %s15, 4
    %p111 = por %p109, %p110
    %p113 = scmp.ne.s32.totalorder %s96, %s112
    %p114 = scmp.eq.s32.totalorder %s15, 0
    %p115 = por %p113, %p114
    %p116 = scmp.le.s32.totalorder 1, %s9
    %p117 = scmp.lt.s32.totalorder %s9, 6
    %p118 = pnand %p116, %p117
    %p119 = pneg %p118
    // Predicated region
    $region9: #{amg_forward.14} parent=5 // pred_check
      _
    $region10: #{amg_forward.14} parent=5 // pred_check_branch
      %121 = sbr.rel (%p118) target = $region12
    $region11: #{amg_forward.14} parent=5 // pred_region
      %s122 = ssub.s32 %s9, 1
      // Predicated region
      $region13: #{amg_forward.14} parent=11 // pred_check
        %p123 = pneg %p30
      $region14: #{amg_forward.14} parent=11 // pred_check_branch
        %125 = sbr.rel (%p123) target = $region16
      $region15: #{amg_forward.14} parent=11 // pred_region
        _
      $region16: #{amg_forward.14} parent=11 // pred_fallthru
        _
    $region12: #{amg_forward.14} parent=5 // pred_fallthru
      _
    %p126 = scmp.lt.s32.totalorder %s9, 5
    // Predicated region
    $region17: #{amg_forward.14} parent=5 // pred_check
      %p127 = pneg %p126
    $region18: #{amg_forward.14} parent=5 // pred_check_branch
      %129 = sbr.rel (%p127) target = $region20
    $region19: #{amg_forward.14} parent=5 // pred_region
      // Predicated region
      $region21: #{amg_forward.14} parent=19 // pred_check
        %p130 = pneg %p50
      $region22: #{amg_forward.14} parent=19 // pred_check_branch
        %132 = sbr.rel (%p130) target = $region24
      $region23: #{amg_forward.14} parent=19 // pred_region
        %p133 = scmp.lt.s32.totalorder %s9, 4
        %s134 = scalar_select %p133, %s9, 4
        %s135 = smul.addr %s134, 2
        %s136 = smul.addr %s135, 8
        %s137 = scalar_lea.vmem %s1, %s136
      $region24: #{amg_forward.14} parent=19 // pred_fallthru
        _
      // Predicated region
      $region25: #{amg_forward.14} parent=19 // pred_check
        %p138 = pneg %p76
      $region26: #{amg_forward.14} parent=19 // pred_check_branch
        %140 = sbr.rel (%p138) target = $region28
      $region27: #{amg_forward.14} parent=19 // pred_region
        %p141 = scmp.lt.s32.totalorder %s9, 4
        %s142 = scalar_select %p141, %s9, 4
        %s143 = smul.addr %s142, 4
        %s144 = smul.addr %s143, 8
        %s145 = scalar_lea.vmem %s2, %s144
      $region28: #{amg_forward.14} parent=19 // pred_fallthru
        _
    $region20: #{amg_forward.14} parent=5 // pred_fallthru
      _
    %p146 = scmp.le.s32.totalorder 1, %s9
    %p147 = scmp.lt.s32.totalorder %s9, 6
    %p148 = pnand %p146, %p147
    %p149 = pneg %p148
    // Predicated region
    $region29: #{amg_forward.14} parent=5 // pred_check
      _
    $region30: #{amg_forward.14} parent=5 // pred_check_branch
      %151 = sbr.rel (%p148) target = $region32
    $region31: #{amg_forward.14} parent=5 // pred_region
      %s152 = ssub.s32 %s9, 1
      %p153 = pneg %p30
      %p154 = pneg %p27
      %p155 = scmp.lt.s32.totalorder %s14, 4
      %s156 = scalar_select %p155, %s14, 4
      %s157 = smul.addr %s156, 2
      %s158 = smul.addr %s157, 8
      %s159 = scalar_lea.vmem %s1, %s158
      %p160 = pneg %p56
      %p161 = pneg %p53
      %p162 = scmp.lt.s32.totalorder %s14, 4
      %s163 = scalar_select %p162, %s14, 4
      %s164 = smul.addr %s163, 4
      %s165 = smul.addr %s164, 8
      %s166 = scalar_lea.vmem %s2, %s165
      %p167 = pneg %p82
      %p168 = pneg %p79
      %p169 = pneg %p108
      %p170 = pneg %p105
      %p171 = scmp.lt.s32.totalorder %s14, 4
      %s172 = scalar_select %p171, %s14, 4
      %s173 = smul.addr %s172, 2
      %s174 = smul.addr %s173, 4
      %s175 = scalar_lea.vmem %s3, %s174
      %p176 = scmp.lt.s32.totalorder %s14, 4
      %s177 = scalar_select %p176, %s14, 4
      %s178 = smul.addr %s177, 2
      %s179 = smul.addr %s178, 8
      %s180 = scalar_lea.vmem %s1, %s179
      %p181 = scmp.lt.s32.totalorder %s14, 4
      %s182 = scalar_select %p181, %s14, 4
      %s183 = smul.addr %s182, 4
      %s184 = smul.addr %s183, 8
      %s185 = scalar_lea.vmem %s2, %s184
      %p186 = scmp.lt.s32.totalorder %s14, 4
      %s187 = scalar_select %p186, %s14, 4
      %s188 = smul.addr %s187, 2
      %s189 = smul.addr %s188, 4
      %s190 = scalar_lea.vmem %s3, %s189
      %v192 = vld [vmem:[%s0] sm:$0xff]
      %v193 = vld [vmem:[%s0 + $0x8] sm:$0xff]
      %v194 = vld [vmem:[%s180] sm:$0xff]
      %v195 = vld [vmem:[%s180 + $0x8] sm:$0xff]
      %197 = vset.pattern.permute.xlu0 0
      %198 = vperm.xlu0 %197, %v194
      %v199 = vpop.permute.xlu0 %198
      %202 = vset.pattern.permute.xlu0 0
      %203 = vperm.xlu0 %202, %v195
      %v204 = vpop.permute.xlu0 %203
      %v206 = vmul.f32 %v192, %v199
      %v207 = vmul.f32 %v193, %v204
      %v208 = vpack.c.bf16 %v207, %v206
      %v209 = vld [vmem:[%s185] sm:$0xff]
      %v210 = vld [vmem:[%s185 + $0x8] sm:$0xff]
      %v211 = vld [vmem:[%s185 + $0x10] sm:$0xff]
      %v212 = vld [vmem:[%s185 + $0x18] sm:$0xff]
      %v213 = vpack.c.bf16 %v210, %v209
      %v214 = vpack.c.bf16 %v212, %v211
      %vm215 = vcmask 261120
      %v217 = vsel %vm215, %v208, 0
      %219 = vmatpush.bf16.msra.mxu0 0
      %220 = vmatpush.bf16.msra.mxu0 0
      %221 = vmatpush.bf16.msra.mxu0 0
      %222 = vmatpush.bf16.msra.mxu0 0
      %223 = vmatpush.bf16.msra.mxu0 0
      %224 = vmatpush.bf16.msra.mxu0 0
      %225 = vmatpush.bf16.msra.mxu0 %v214
      %226 = vmatpush.bf16.msra.mxu0 %v213
      %227 = vmatmul.bf16.gmra.mxu0 %v217
      %v228 = vpop.f32.mrf.mxu0
      %v229 = vadd.f32 0.0, %v228
      %v230 = vpop.f32.mrf.mxu0
      %v231 = vadd.f32 0.0, %v230
      %232 = vdwg.mxu0
      %v233 = vpack.c.bf16 %v229, %v229
      %v234 = vpack.c.bf16 %v231, %v231
      %vm235 = vcmask 257024
      %236 = vst.msk [vmem:[%s190] sm:$0xf] %vm235, %v233
      %237 = vst.msk [vmem:[%s190 + $0x4] sm:$0xf] %vm235, %v234
      %p238 = scmp.lt.s32.totalorder %s14, 4
      %s239 = scalar_select %p238, %s14, 4
      %s240 = smul.addr %s239, 2
      %s241 = smul.addr %s240, 4
      %s242 = scalar_lea.vmem %s3, %s241
      // Predicated region
      $region33: #{amg_forward.14} parent=31 // pred_check
        %p243 = pneg %p105
      $region34: #{amg_forward.14} parent=31 // pred_check_branch
        %245 = sbr.rel (%p243) target = $region36
      $region35: #{amg_forward.14} parent=31 // pred_region
        _
      $region36: #{amg_forward.14} parent=31 // pred_fallthru
        _
    $region32: #{amg_forward.14} parent=5 // pred_fallthru
      _
    %p246 = scmp.le.s32.totalorder 2, %s9
    // Predicated region
    $region37: #{amg_forward.14} parent=5 // pred_check
      %p247 = pneg %p246
    $region38: #{amg_forward.14} parent=5 // pred_check_branch
      %249 = sbr.rel (%p247) target = $region40
    $region39: #{amg_forward.14} parent=5 // pred_region
      %s250 = ssub.s32 %s9, 2
      // Predicated region
      $region41: #{amg_forward.14} parent=39 // pred_check
        %p251 = pneg %p111
      $region42: #{amg_forward.14} parent=39 // pred_check_branch
        %253 = sbr.rel (%p251) target = $region44
      $region43: #{amg_forward.14} parent=39 // pred_region
        %p254 = scmp.lt.s32.totalorder %s15, 4
        %s255 = scalar_select %p254, %s15, 4
        %s256 = smul.addr %s255, 2
        %s257 = smul.addr %s256, 4
        %s258 = scalar_lea.vmem %s3, %s257
      $region44: #{amg_forward.14} parent=39 // pred_fallthru
        _
    $region40: #{amg_forward.14} parent=5 // pred_fallthru
      _
  $region6: #{amg_forward.14} parent=0 // loop_footer
    %s13 = sadd.s32 1, %s9
  $region7: #{amg_forward.14} parent=0 // loop_footer_branch
    %8 = sbr.rel target = $region3
  $region8: #{amg_forward.14} parent=0 // loop_exit
    _

// kernel: amg_forward.16
$region0: #{amg_forward.16}
  #allocation0 [shape = 'u32[]', space=smem, size = 0x4, offset = 0x4, fixed_abs, tag = 'smem constant byte address 0x4 - core index']
  #allocation1 [shape = 'u32[72,128]{1,0:T(1,128)}', space=vmem, size = 0x9000, scoped, tag = 'internal scratch']
  #allocation2 [shape = 'f32[16,32]{1,0:T(8,128)}', space=vmem, size = 0x2000, scoped, tag = 'scratch operand']
  %s0 = inlined_call_operand.vmem [shape: s32[16,16], index: 0, kind: input, shape index: {}]
  %s1 = inlined_call_operand.vmem [shape: f32[5,16,1], index: 1, kind: input, shape index: {}]
  %s2 = inlined_call_operand.vmem [shape: bf16[5,16,32], index: 2, kind: input, shape index: {}]
  %s3 = inlined_call_operand.vmem [shape: f32[1,32], index: 3, kind: input, shape index: {}]
  %s4 = inlined_call_operand.vmem [shape: f32[16,32], index: 4, kind: output, shape index: {}]
  %s5 = sld [smem:[#allocation0]]
  $region57: #{amg_forward.16} parent=0
    _
  %s7 = ssub.s32 1, %s5
  %s8 = scalar_select 0, %s7, %s5
  loop: start=0, step=1, limit=7
  $region2: #{amg_forward.16} parent=0 // loop_pre_header
    _
  $region3: #{amg_forward.16} parent=0 // loop_header
    %s10 = sphi 0, %s14
    %p11 = scmp.ge.s32.totalorder %s10, 7
    %s17 = sphi 0, %s29
    %s18 = sphi 0, %s25
    %s19 = sphi 0, %s17
    %s20 = sphi 0, %s18
    %s21 = sphi 0, %s19
    %s22 = sphi 0, %s20
    %s32 = sphi 0, %s34
    %s35 = sphi 0, %s32
    %s36 = sphi 0, %s35
    %s52 = sphi 0, %s36
    %s60 = sphi 0, %s62
    %s63 = sphi 0, %s60
    %s64 = sphi 0, %s63
    %s80 = sphi 0, %s64
    %s86 = sphi 0, %s88
    %s89 = sphi 0, %s86
    %s90 = sphi 0, %s89
    %s106 = sphi 0, %s90
    %s110 = sphi 0, %s110
    %s112 = sphi 0, %s110
    %s113 = sphi 0, %s112
    %s127 = sphi 0, %s113
    %s133 = sphi 0, %s135
    %s136 = sphi 0, %s133
    %s137 = sphi 0, %s136
    %s153 = sphi 0, %s137
  $region4: #{amg_forward.16} parent=0 // loop_header_branch
    %13 = sbr.rel (%p11) target = $region8
  $region5: #{amg_forward.16} parent=0 // loop_body
    %s15 = ssub.s32 %s10, 1
    %s16 = ssub.s32 %s10, 2
    %s23 = sadd.s32 1, %s18
    %p24 = scmp.ge.s32.totalorder %s23, 5
    %s25 = scalar_select %p24, 0, %s23
    %s26 = sadd.s32 1, %s17
    %s27 = scalar_select %p24, %s26, %s17
    %p28 = scmp.ge.s32.totalorder %s27, 1
    %s29 = scalar_select %p28, 0, %s27
    %s30 = ssub.s32 %s17, %s29
    %p31 = scmp.eq.s32.totalorder %s30, 0
    %s33 = sadd.s32 %s32, 1
    %s34 = scalar_select %p31, %s32, %s33
    %p37 = pneg %p31
    %p38 = scmp.eq.s32.totalorder %s10, 4
    %p39 = por %p37, %p38
    %p40 = scmp.ne.s32.totalorder %s32, %s35
    %p41 = scmp.eq.s32.totalorder %s10, 0
    %p42 = por %p40, %p41
    %p43 = scmp.ne.s32.totalorder %s32, %s35
    %p44 = scmp.eq.s32.totalorder %s15, 4
    %p45 = por %p43, %p44
    %p46 = scmp.ne.s32.totalorder %s35, %s36
    %p47 = scmp.eq.s32.totalorder %s15, 0
    %p48 = por %p46, %p47
    %p49 = scmp.ne.s32.totalorder %s35, %s36
    %p50 = scmp.eq.s32.totalorder %s16, 4
    %p51 = por %p49, %p50
    %p53 = scmp.ne.s32.totalorder %s36, %s52
    %p54 = scmp.eq.s32.totalorder %s16, 0
    %p55 = por %p53, %p54
    %s56 = ssub.s32 %s18, %s25
    %s57 = ssub.s32 %s17, %s29
    %s58 = sor.u32 %s56, %s57
    %p59 = scmp.eq.s32.totalorder %s58, 0
    %s61 = sadd.s32 %s60, 1
    %s62 = scalar_select %p59, %s60, %s61
    %p65 = pneg %p59
    %p66 = scmp.eq.s32.totalorder %s10, 4
    %p67 = por %p65, %p66
    %p68 = scmp.ne.s32.totalorder %s60, %s63
    %p69 = scmp.eq.s32.totalorder %s10, 0
    %p70 = por %p68, %p69
    %p71 = scmp.ne.s32.totalorder %s60, %s63
    %p72 = scmp.eq.s32.totalorder %s15, 4
    %p73 = por %p71, %p72
    %p74 = scmp.ne.s32.totalorder %s63, %s64
    %p75 = scmp.eq.s32.totalorder %s15, 0
    %p76 = por %p74, %p75
    %p77 = scmp.ne.s32.totalorder %s63, %s64
    %p78 = scmp.eq.s32.totalorder %s16, 4
    %p79 = por %p77, %p78
    %p81 = scmp.ne.s32.totalorder %s64, %s80
    %p82 = scmp.eq.s32.totalorder %s16, 0
    %p83 = por %p81, %p82
    %s84 = ssub.s32 %s18, %s25
    %p85 = scmp.eq.s32.totalorder %s84, 0
    %s87 = sadd.s32 %s86, 1
    %s88 = scalar_select %p85, %s86, %s87
    %p91 = pneg %p85
    %p92 = scmp.eq.s32.totalorder %s10, 4
    %p93 = por %p91, %p92
    %p94 = scmp.ne.s32.totalorder %s86, %s89
    %p95 = scmp.eq.s32.totalorder %s10, 0
    %p96 = por %p94, %p95
    %p97 = scmp.ne.s32.totalorder %s86, %s89
    %p98 = scmp.eq.s32.totalorder %s15, 4
    %p99 = por %p97, %p98
    %p100 = scmp.ne.s32.totalorder %s89, %s90
    %p101 = scmp.eq.s32.totalorder %s15, 0
    %p102 = por %p100, %p101
    %p103 = scmp.ne.s32.totalorder %s89, %s90
    %p104 = scmp.eq.s32.totalorder %s16, 4
    %p105 = por %p103, %p104
    %p107 = scmp.ne.s32.totalorder %s90, %s106
    %p108 = scmp.eq.s32.totalorder %s16, 0
    %p109 = por %p107, %p108
    %s111 = sadd.s32 %s110, 1
    %p114 = scmp.eq.s32.totalorder %s10, 4
    %p115 = scmp.ne.s32.totalorder %s110, %s112
    %p116 = scmp.eq.s32.totalorder %s10, 0
    %p117 = por %p115, %p116
    %p118 = scmp.ne.s32.totalorder %s110, %s112
    %p119 = scmp.eq.s32.totalorder %s15, 4
    %p120 = por %p118, %p119
    %p121 = scmp.ne.s32.totalorder %s112, %s113
    %p122 = scmp.eq.s32.totalorder %s15, 0
    %p123 = por %p121, %p122
    %p124 = scmp.ne.s32.totalorder %s112, %s113
    %p125 = scmp.eq.s32.totalorder %s16, 4
    %p126 = por %p124, %p125
    %p128 = scmp.ne.s32.totalorder %s113, %s127
    %p129 = scmp.eq.s32.totalorder %s16, 0
    %p130 = por %p128, %p129
    %s131 = ssub.s32 %s17, %s29
    %p132 = scmp.eq.s32.totalorder %s131, 0
    %s134 = sadd.s32 %s133, 1
    %s135 = scalar_select %p132, %s133, %s134
    %p138 = pneg %p132
    %p139 = scmp.eq.s32.totalorder %s10, 4
    %p140 = por %p138, %p139
    %p141 = scmp.ne.s32.totalorder %s133, %s136
    %p142 = scmp.eq.s32.totalorder %s10, 0
    %p143 = por %p141, %p142
    %p144 = scmp.ne.s32.totalorder %s133, %s136
    %p145 = scmp.eq.s32.totalorder %s15, 4
    %p146 = por %p144, %p145
    %p147 = scmp.ne.s32.totalorder %s136, %s137
    %p148 = scmp.eq.s32.totalorder %s15, 0
    %p149 = por %p147, %p148
    %p150 = scmp.ne.s32.totalorder %s136, %s137
    %p151 = scmp.eq.s32.totalorder %s16, 4
    %p152 = por %p150, %p151
    %p154 = scmp.ne.s32.totalorder %s137, %s153
    %p155 = scmp.eq.s32.totalorder %s16, 0
    %p156 = por %p154, %p155
    %p157 = scmp.le.s32.totalorder 1, %s10
    %p158 = scmp.lt.s32.totalorder %s10, 6
    %p159 = pnand %p157, %p158
    %p160 = pneg %p159
    // Predicated region
    $region9: #{amg_forward.16} parent=5 // pred_check
      _
    $region10: #{amg_forward.16} parent=5 // pred_check_branch
      %162 = sbr.rel (%p159) target = $region12
    $region11: #{amg_forward.16} parent=5 // pred_region
      %s163 = ssub.s32 %s10, 1
      // Predicated region
      $region13: #{amg_forward.16} parent=11 // pred_check
        %p164 = pneg %p48
      $region14: #{amg_forward.16} parent=11 // pred_check_branch
        %166 = sbr.rel (%p164) target = $region16
      $region15: #{amg_forward.16} parent=11 // pred_region
        %s167 = smul.u32 2, %s19
        %p168 = scmp.lt.s32.totalorder %s167, 1
        %s169 = scalar_select %p168, %s167, 1
        %s170 = smul.addr %s169, 8
        %s171 = scalar_lea.vmem %s0, %s170
        %s172 = smul.u32 2, %s19
      $region16: #{amg_forward.16} parent=11 // pred_fallthru
        _
      // Predicated region
      $region17: #{amg_forward.16} parent=11 // pred_check
        %p173 = pneg %p123
      $region18: #{amg_forward.16} parent=11 // pred_check_branch
        %175 = sbr.rel (%p173) target = $region20
      $region19: #{amg_forward.16} parent=11 // pred_region
        _
      $region20: #{amg_forward.16} parent=11 // pred_fallthru
        _
    $region12: #{amg_forward.16} parent=5 // pred_fallthru
      _
    %p176 = scmp.lt.s32.totalorder %s10, 5
    // Predicated region
    $region21: #{amg_forward.16} parent=5 // pred_check
      %p177 = pneg %p176
    $region22: #{amg_forward.16} parent=5 // pred_check_branch
      %179 = sbr.rel (%p177) target = $region24
    $region23: #{amg_forward.16} parent=5 // pred_region
      // Predicated region
      $region25: #{amg_forward.16} parent=23 // pred_check
        %p180 = pneg %p70
      $region26: #{amg_forward.16} parent=23 // pred_check_branch
        %182 = sbr.rel (%p180) target = $region28
      $region27: #{amg_forward.16} parent=23 // pred_region
        %s183 = smul.u32 2, %s17
        %p184 = scmp.lt.s32.totalorder %s18, 4
        %s185 = scalar_select %p184, %s18, 4
        %p186 = scmp.lt.s32.totalorder %s183, 1
        %s187 = scalar_select %p186, %s183, 1
        %s188 = smul.addr %s185, 2
        %s189 = sadd.s32 %s187, %s188
        %s190 = smul.addr %s189, 8
        %s191 = scalar_lea.vmem %s1, %s190
        %s192 = smul.u32 2, %s17
      $region28: #{amg_forward.16} parent=23 // pred_fallthru
        _
      // Predicated region
      $region29: #{amg_forward.16} parent=23 // pred_check
        %p193 = pneg %p96
      $region30: #{amg_forward.16} parent=23 // pred_check_branch
        %195 = sbr.rel (%p193) target = $region32
      $region31: #{amg_forward.16} parent=23 // pred_region
        %p196 = scmp.lt.s32.totalorder %s18, 4
        %s197 = scalar_select %p196, %s18, 4
        %s198 = smul.addr %s197, 2
        %s199 = smul.addr %s198, 4
        %s200 = scalar_lea.vmem %s2, %s199
      $region32: #{amg_forward.16} parent=23 // pred_fallthru
        _
    $region24: #{amg_forward.16} parent=5 // pred_fallthru
      _
    %p201 = scmp.le.s32.totalorder 1, %s10
    %p202 = scmp.lt.s32.totalorder %s10, 6
    %p203 = pnand %p201, %p202
    %p204 = pneg %p203
    // Predicated region
    $region33: #{amg_forward.16} parent=5 // pred_check
      _
    $region34: #{amg_forward.16} parent=5 // pred_check_branch
      %206 = sbr.rel (%p203) target = $region36
    $region35: #{amg_forward.16} parent=5 // pred_region
      %s207 = ssub.s32 %s10, 1
      %s208 = smul.u32 2, %s19
      %p209 = scmp.lt.s32.totalorder %s208, 1
      %s210 = scalar_select %p209, %s208, 1
      %s211 = smul.addr %s210, 8
      %s212 = scalar_lea.vmem %s0, %s211
      %p213 = pneg %p48
      %p214 = pneg %p45
      %s215 = smul.u32 2, %s19
      %p216 = scmp.lt.s32.totalorder %s20, 4
      %s217 = scalar_select %p216, %s20, 4
      %p218 = scmp.lt.s32.totalorder %s215, 1
      %s219 = scalar_select %p218, %s215, 1
      %s220 = smul.addr %s217, 2
      %s221 = sadd.s32 %s219, %s220
      %s222 = smul.addr %s221, 8
      %s223 = scalar_lea.vmem %s1, %s222
      %p224 = pneg %p76
      %p225 = pneg %p73
      %p226 = scmp.lt.s32.totalorder %s20, 4
      %s227 = scalar_select %p226, %s20, 4
      %s228 = smul.addr %s227, 2
      %s229 = smul.addr %s228, 4
      %s230 = scalar_lea.vmem %s2, %s229
      %p231 = pneg %p102
      %p232 = pneg %p99
      %p233 = pneg %p123
      %p234 = pneg %p120
      %p235 = pneg %p149
      %p236 = pneg %p146
      %s237 = smul.u32 2, %s19
      %p238 = scmp.lt.s32.totalorder %s237, 1
      %s239 = scalar_select %p238, %s237, 1
      %s240 = smul.addr %s239, 8
      %s241 = scalar_lea.vmem %s4, %s240
      %s242 = smul.u32 2, %s19
      %p243 = scmp.lt.s32.totalorder %s242, 1
      %s244 = scalar_select %p243, %s242, 1
      %s245 = smul.addr %s244, 8
      %s246 = scalar_lea.vmem %s0, %s245
      %s247 = smul.u32 2, %s19
      %s248 = smul.u32 2, %s19
      %p249 = scmp.lt.s32.totalorder %s20, 4
      %s250 = scalar_select %p249, %s20, 4
      %p251 = scmp.lt.s32.totalorder %s248, 1
      %s252 = scalar_select %p251, %s248, 1
      %s253 = smul.addr %s250, 2
      %s254 = sadd.s32 %s252, %s253
      %s255 = smul.addr %s254, 8
      %s256 = scalar_lea.vmem %s1, %s255
      %s257 = smul.u32 2, %s19
      %p258 = scmp.lt.s32.totalorder %s20, 4
      %s259 = scalar_select %p258, %s20, 4
      %s260 = smul.addr %s259, 2
      %s261 = smul.addr %s260, 4
      %s262 = scalar_lea.vmem %s2, %s261
      %s263 = smul.u32 2, %s19
      %p264 = scmp.lt.s32.totalorder %s263, 1
      %s265 = scalar_select %p264, %s263, 1
      %s266 = smul.addr %s265, 8
      %s267 = scalar_lea.vmem %s4, %s266
      %s268 = smul.u32 2, %s19
      %p270 = scmp.eq.s32.totalorder %s20, 0
      // Predicated region
      $region37: #{amg_forward.16} parent=35 // pred_check
        %p271 = pneg %p270
      $region38: #{amg_forward.16} parent=35 // pred_check_branch
        %273 = sbr.rel (%p271) target = $region40
      $region39: #{amg_forward.16} parent=35 // pred_region
        %vm274 = vcmask 261120
        %275 = vst.msk [vmem:[#allocation2] sm:$0xff] %vm274, 0.0
        %276 = vst.msk [vmem:[#allocation2 + $0x8] sm:$0xff] %vm274, 0.0
      $region40: #{amg_forward.16} parent=35 // pred_fallthru
        _
      %v277 = vld [vmem:[%s246] sm:$0xff]
      %v278 = vld [vmem:[%s246 + $0x8] sm:$0xff]
      %v279 = vstv %s20
      %vm280 = vcmp.eq.s32.totalorder %v277, %v279
      %vm281 = vcmp.eq.s32.totalorder %v278, %v279
      %v282 = vsel %vm280, 1, 0
      %v283 = vsel %vm281, 1, 0
      %v284 = vcvt.s32.f32 %v282
      %v285 = vcvt.s32.f32 %v283
      %v286 = vpack.c.bf16 %v285, %v284
      %v287 = vld [vmem:[%s262] sm:$0xf]
      %v288 = vld [vmem:[%s262 + $0x4] sm:$0xf]
      %v291 = vunpack.c.l.b16 %v287
      %v292 = vunpack.c.l.b16 %v288
      %v293 = vpack.c.b16 %v292, %v291
      %vm295 = vcmask 130048
      %v297 = vsel %vm295, %v286, 0
      %299 = vmatpush.bf16.msra.mxu0 0
      %300 = vmatpush.bf16.msra.mxu0 0
      %301 = vmatpush.bf16.msra.mxu0 0
      %302 = vmatpush.bf16.msra.mxu0 0
      %303 = vmatpush.bf16.msra.mxu0 0
      %304 = vmatpush.bf16.msra.mxu0 0
      %305 = vmatpush.bf16.msra.mxu0 0
      %306 = vmatpush.bf16.msra.mxu0 %v293
      %307 = vmatmul.bf16.gmra.mxu0 %v297
      %v308 = vpop.f32.mrf.mxu0
      %v309 = vadd.f32 0.0, %v308
      %v310 = vpop.f32.mrf.mxu0
      %v311 = vadd.f32 0.0, %v310
      %312 = vdwg.mxu0
      %v313 = vld [vmem:[#allocation2] sm:$0xff]
      %v314 = vld [vmem:[#allocation2 + $0x8] sm:$0xff]
      %v315 = vld [vmem:[%s256] sm:$0xff]
      %v316 = vld [vmem:[%s256 + $0x8] sm:$0xff]
      %318 = vset.pattern.permute.xlu0 0
      %319 = vperm.xlu0 %318, %v315
      %v320 = vpop.permute.xlu0 %319
      %323 = vset.pattern.permute.xlu0 0
      %324 = vperm.xlu0 %323, %v316
      %v325 = vpop.permute.xlu0 %324
      %v327 = vmul.f32 %v320, %v309
      %v328 = vmul.f32 %v325, %v311
      %v329 = vadd.f32 %v313, %v327
      %v330 = vadd.f32 %v314, %v328
      %vm331 = vcmask 261120
      %332 = vst.msk [vmem:[#allocation2] sm:$0xff] %vm331, %v329
      %333 = vst.msk [vmem:[#allocation2 + $0x8] sm:$0xff] %vm331, %v330
      %p334 = scmp.eq.s32.totalorder %s20, 4
      // Predicated region
      $region41: #{amg_forward.16} parent=35 // pred_check
        %p335 = pneg %p334
      $region42: #{amg_forward.16} parent=35 // pred_check_branch
        %337 = sbr.rel (%p335) target = $region44
      $region43: #{amg_forward.16} parent=35 // pred_region
        %v338 = vld [vmem:[#allocation2] sm:$0xff]
        %v339 = vld [vmem:[#allocation2 + $0x8] sm:$0xff]
        %v340 = vld [vmem:[%s3] sm:$0x1]
        %v342 = vperm.slane %v340, 0
        %v344 = vadd.f32 %v338, %v342
        %v345 = vadd.f32 %v339, %v342
        %v346 = vtanh.pop %v344
        %v347 = vtanh.pop %v345
        %348 = vst.msk [vmem:[%s267] sm:$0xff] %vm331, %v346
        %349 = vst.msk [vmem:[%s267 + $0x8] sm:$0xff] %vm331, %v347
      $region44: #{amg_forward.16} parent=35 // pred_fallthru
        _
      %s350 = smul.u32 2, %s19
      %p351 = scmp.lt.s32.totalorder %s350, 1
      %s352 = scalar_select %p351, %s350, 1
      %s353 = smul.addr %s352, 8
      %s354 = scalar_lea.vmem %s4, %s353
      // Predicated region
      $region45: #{amg_forward.16} parent=35 // pred_check
        %p355 = pneg %p146
      $region46: #{amg_forward.16} parent=35 // pred_check_branch
        %357 = sbr.rel (%p355) target = $region48
      $region47: #{amg_forward.16} parent=35 // pred_region
        %s358 = smul.u32 2, %s19
      $region48: #{amg_forward.16} parent=35 // pred_fallthru
        _
      // Predicated region
      $region49: #{amg_forward.16} parent=35 // pred_check
        %p359 = pneg %p146
      $region50: #{amg_forward.16} parent=35 // pred_check_branch
        %361 = sbr.rel (%p359) target = $region52
      $region51: #{amg_forward.16} parent=35 // pred_region
        %s362 = smul.u32 2, %s19
        %p363 = scmp.lt.s32.totalorder %s362, 1
        %s364 = scalar_select %p363, %s362, 1
        %s365 = smul.addr %s364, 8
        %s366 = scalar_lea.vmem %s4, %s365
      $region52: #{amg_forward.16} parent=35 // pred_fallthru
        _
    $region36: #{amg_forward.16} parent=5 // pred_fallthru
      _
    %p367 = scmp.le.s32.totalorder 2, %s10
    // Predicated region
    $region53: #{amg_forward.16} parent=5 // pred_check
      %p368 = pneg %p367
    $region54: #{amg_forward.16} parent=5 // pred_check_branch
      %370 = sbr.rel (%p368) target = $region56
    $region55: #{amg_forward.16} parent=5 // pred_region
      %s371 = ssub.s32 %s10, 2
    $region56: #{amg_forward.16} parent=5 // pred_fallthru
      _
  $region6: #{amg_forward.16} parent=0 // loop_footer
    %s14 = sadd.s32 1, %s10
  $region7: #{amg_forward.16} parent=0 // loop_footer_branch
    %9 = sbr.rel target = $region3
  $region8: #{amg_forward.16} parent=0 // loop_exit
    _

// kernel: amg_forward.18
$region0: #{amg_forward.18}
  #allocation0 [shape = 'u32[]', space=smem, size = 0x4, offset = 0x4, fixed_abs, tag = 'smem constant byte address 0x4 - core index']
  #allocation1 [shape = 'u32[72,128]{1,0:T(1,128)}', space=vmem, size = 0x9000, scoped, tag = 'internal scratch']
  %s0 = inlined_call_operand.vmem [shape: f32[16,32], index: 0, kind: input, shape index: {}]
  %s1 = inlined_call_operand.vmem [shape: f32[32,16], index: 1, kind: input, shape index: {}]
  %s2 = inlined_call_operand.vmem [shape: f32[1,16], index: 2, kind: input, shape index: {}]
  %s3 = inlined_call_operand.vmem [shape: f32[16,16], index: 3, kind: output, shape index: {}]
  %s4 = sld [smem:[#allocation0]]
  $region22: #{amg_forward.18} parent=0
    _
  %s6 = ssub.s32 1, %s4
  %s7 = scalar_select 0, %s6, %s4
  // Predicated region
  $region2: #{amg_forward.18} parent=0 // pred_check
    _
  $region3: #{amg_forward.18} parent=0 // pred_check_branch
    %9 = sbr.rel (0) target = $region5
  $region4: #{amg_forward.18} parent=0 // pred_region
    _
  $region5: #{amg_forward.18} parent=0 // pred_fallthru
    _
  // Predicated region
  $region6: #{amg_forward.18} parent=0 // pred_check
    _
  $region7: #{amg_forward.18} parent=0 // pred_check_branch
    %11 = sbr.rel (0) target = $region9
  $region8: #{amg_forward.18} parent=0 // pred_region
    _
  $region9: #{amg_forward.18} parent=0 // pred_fallthru
    _
  // Predicated region
  $region10: #{amg_forward.18} parent=0 // pred_check
    _
  $region11: #{amg_forward.18} parent=0 // pred_check_branch
    %13 = sbr.rel (0) target = $region13
  $region12: #{amg_forward.18} parent=0 // pred_region
    _
  $region13: #{amg_forward.18} parent=0 // pred_fallthru
    _
  %v14 = vld [vmem:[%s0] sm:$0xff]
  %v15 = vld [vmem:[%s0 + $0x8] sm:$0xff]
  %v16 = vld [vmem:[%s1] sm:$0xff]
  %v17 = vld [vmem:[%s1 + $0x8] sm:$0xff]
  %v18 = vld [vmem:[%s1 + $0x10] sm:$0xff]
  %v19 = vld [vmem:[%s1 + $0x18] sm:$0xff]
  %v20 = vld [vmem:[%s2] sm:$0x1]
  %v22 = vperm.slane %v20, 0
  %vm24 = vcmask 261120
  %v26 = vsel %vm24, %v14, 0
  %v29 = vsel %vm24, %v15, 0
  %31 = vmatpush.msra.mxu0 0.0
  %32 = vmatpush.msra.mxu0 0.0
  %33 = vmatpush.msra.mxu0 0.0
  %34 = vmatpush.msra.mxu0 0.0
  %35 = vmatpush.msra.mxu0 0.0
  %36 = vmatpush.msra.mxu0 0.0
  %37 = vmatpush.msra.mxu0 0.0
  %38 = vmatpush.msra.mxu0 0.0
  %39 = vmatpush.msra.mxu0 0.0
  %40 = vmatpush.msra.mxu0 0.0
  %41 = vmatpush.msra.mxu0 0.0
  %42 = vmatpush.msra.mxu0 0.0
  %43 = vmatpush.msra.mxu0 %v19
  %44 = vmatpush.msra.mxu0 %v18
  %45 = vmatpush.msra.mxu0 %v17
  %46 = vmatpush.msra.mxu0 %v16
  %47 = vmatmul.f32.gmra.mxu0 %v26
  %v48 = vpop.f32.mrf.mxu0
  %v49 = vadd.f32 %v22, %v48
  %50 = vmatmul.f32.gmra.mxu0 %v29
  %v51 = vpop.f32.mrf.mxu0
  %v52 = vadd.f32 %v22, %v51
  %53 = vdwg.mxu0
  %vm54 = vcmask 130048
  %55 = vst.msk [vmem:[%s3] sm:$0xff] %vm54, %v49
  %56 = vst.msk [vmem:[%s3 + $0x8] sm:$0xff] %vm54, %v52
  // Predicated region
  $region14: #{amg_forward.18} parent=0 // pred_check
    _
  $region15: #{amg_forward.18} parent=0 // pred_check_branch
    %58 = sbr.rel (0) target = $region17
  $region16: #{amg_forward.18} parent=0 // pred_region
    _
  $region17: #{amg_forward.18} parent=0 // pred_fallthru
    _
  // Predicated region
  $region18: #{amg_forward.18} parent=0 // pred_check
    _
  $region19: #{amg_forward.18} parent=0 // pred_check_branch
    %60 = sbr.rel (0) target = $region21
  $region20: #{amg_forward.18} parent=0 // pred_region
    _
  $region21: #{amg_forward.18} parent=0 // pred_fallthru
    _

// kernel: amg_forward.19
$region0: #{amg_forward.19}
  #allocation0 [shape = 'u32[]', space=smem, size = 0x4, offset = 0x4, fixed_abs, tag = 'smem constant byte address 0x4 - core index']
  #allocation1 [shape = 'u32[72,128]{1,0:T(1,128)}', space=vmem, size = 0x9000, scoped, tag = 'internal scratch']
  %s0 = inlined_call_operand.vmem [shape: f32[16,16], index: 0, kind: input, shape index: {}]
  %s1 = inlined_call_operand.vmem [shape: bf16[16,16], index: 1, kind: input, shape index: {}]
  %s2 = inlined_call_operand.vmem [shape: f32[2,16,16], index: 2, kind: input, shape index: {}]
  %s3 = inlined_call_operand.vmem [shape: s32[16,16], index: 3, kind: input, shape index: {}]
  %s4 = inlined_call_operand.vmem [shape: f32[2,5], index: 4, kind: input, shape index: {}]
  %s5 = inlined_call_operand.vmem [shape: f32[5], index: 5, kind: input, shape index: {}]
  %s6 = inlined_call_operand.hbm [shape: f32[5,16,16], index: 6, kind: output, shape index: {0}]
  %s7 = inlined_call_operand.vmem [shape: f32[1,1,128], index: 7, kind: output, shape index: {1}]
  %8 = xla_tuple %s6, %s7
  %s9 = sld [smem:[#allocation0]]
  $region50: #{amg_forward.19} parent=0
    _
  %s11 = ssub.s32 1, %s9
  %s12 = scalar_select 0, %s11, %s9
  $region1: #{amg_forward.19} parent=0
    #allocation2 [shape = 'u8[1024]{0}', space=smem, size = 0x400, scoped, tag = 'input window, operand 4, single buffered']
    #allocation3 [shape = 's32[1]{0}', space=sflag, size = 0x4, scoped, tag = 'scoped memory for amg_forward.19']
    #allocation4 [shape = 's32[1]{0}', space=sflag, size = 0x4, scoped, tag = 'scoped memory for amg_forward.19']
    #allocation5 [shape = 'u8[512]{0}', space=smem, size = 0x200, scoped, tag = 'input window, operand 5, single buffered']
    #allocation6 [shape = 's32[1]{0}', space=sflag, size = 0x4, scoped, tag = 'scoped memory for amg_forward.19']
    #allocation7 [shape = 'u8[40960]{0}', space=vmem, size = 0xa000, scoped, tag = 'output window, operand 0, single buffered']
    %13 = vsyncpa [#allocation4], 0
    %14 = vsyncpa [#allocation6], 0
    %15 = vsyncpa [#allocation3], 0
    // Predicated region
    $region2: #{amg_forward.19} parent=1 // pred_check
      _
    $region3: #{amg_forward.19} parent=1 // pred_check_branch
      %17 = sbr.rel (0) target = $region5
    $region4: #{amg_forward.19} parent=1 // pred_region
      _
    $region5: #{amg_forward.19} parent=1 // pred_fallthru
      _
    // Predicated region
    $region6: #{amg_forward.19} parent=1 // pred_check
      _
    $region7: #{amg_forward.19} parent=1 // pred_check_branch
      %19 = sbr.rel (0) target = $region9
    $region8: #{amg_forward.19} parent=1 // pred_region
      _
    $region9: #{amg_forward.19} parent=1 // pred_fallthru
      _
    // Predicated region
    $region10: #{amg_forward.19} parent=1 // pred_check
      _
    $region11: #{amg_forward.19} parent=1 // pred_check_branch
      %21 = sbr.rel (0) target = $region13
    $region12: #{amg_forward.19} parent=1 // pred_region
      _
    $region13: #{amg_forward.19} parent=1 // pred_fallthru
      _
    // Predicated region
    $region14: #{amg_forward.19} parent=1 // pred_check
      _
    $region15: #{amg_forward.19} parent=1 // pred_check_branch
      %23 = sbr.rel (0) target = $region17
    $region16: #{amg_forward.19} parent=1 // pred_region
      _
    $region17: #{amg_forward.19} parent=1 // pred_fallthru
      _
    // Predicated region
    $region18: #{amg_forward.19} parent=1 // pred_check
      _
    $region19: #{amg_forward.19} parent=1 // pred_check_branch
      %25 = sbr.rel (0) target = $region21
    $region20: #{amg_forward.19} parent=1 // pred_region
      %27 = vsyncadd [#allocation4], 0
      %s29 = sshll.u32 %s4, 4
      %s30 = int_to_ptr.vmem [resolvable:$true] %s29
      %32 = dma.vmem_to_smem %s30, 32, [#allocation2], [#allocation4]
    $region21: #{amg_forward.19} parent=1 // pred_fallthru
      _
    // Predicated region
    $region22: #{amg_forward.19} parent=1 // pred_check
      _
    $region23: #{amg_forward.19} parent=1 // pred_check_branch
      %34 = sbr.rel (0) target = $region25
    $region24: #{amg_forward.19} parent=1 // pred_region
      %36 = vsyncadd [#allocation6], 0
      %s38 = sshll.u32 %s5, 4
      %s39 = int_to_ptr.vmem [resolvable:$true] %s38
      %41 = dma.vmem_to_smem %s39, 16, [#allocation5], [#allocation6]
    $region25: #{amg_forward.19} parent=1 // pred_fallthru
      _
    // Predicated region
    $region26: #{amg_forward.19} parent=1 // pred_check
      _
    $region27: #{amg_forward.19} parent=1 // pred_check_branch
      %43 = sbr.rel (0) target = $region29
    $region28: #{amg_forward.19} parent=1 // pred_region
      %45 = dma.done [#allocation4], 32
    $region29: #{amg_forward.19} parent=1 // pred_fallthru
      _
    // Predicated region
    $region30: #{amg_forward.19} parent=1 // pred_check
      _
    $region31: #{amg_forward.19} parent=1 // pred_check_branch
      %47 = sbr.rel (0) target = $region33
    $region32: #{amg_forward.19} parent=1 // pred_region
      %49 = dma.done [#allocation6], 16
    $region33: #{amg_forward.19} parent=1 // pred_fallthru
      _
    %50 = sfence
    %v52 = vld [vmem:[%s0] sm:$0xff]
    %v53 = vld [vmem:[%s0 + $0x8] sm:$0xff]
    %v54 = vpack.c.bf16 %v53, %v52
    %v55 = vld [vmem:[%s1] sm:$0xf]
    %v56 = vld [vmem:[%s1 + $0x4] sm:$0xf]
    %v57 = vld [vmem:[%s3] sm:$0xff]
    %v58 = vld [vmem:[%s3 + $0x8] sm:$0xff]
    %vm59 = vcmp.ge.s32.totalorder %v57, 0
    %vm60 = vcmp.ge.s32.totalorder %v58, 0
    %v61 = vsel %vm59, 1, 0
    %v62 = vsel %vm60, 1, 0
    %v63 = vcvt.s32.f32 %v61
    %v64 = vcvt.s32.f32 %v62
    %v65 = vld [vmem:[%s2] sm:$0xff]
    %v66 = vld [vmem:[%s2 + $0x8] sm:$0xff]
    %v67 = vpack.c.bf16 %v66, %v65
    %vm68 = vcmask 130048
    %v70 = vsel %vm68, %v54, 0
    %72 = vmatpush.bf16.msra.mxu0 0
    %73 = vmatpush.bf16.msra.mxu0 0
    %74 = vmatpush.bf16.msra.mxu0 0
    %75 = vmatpush.bf16.msra.mxu0 0
    %76 = vmatpush.bf16.msra.mxu0 0
    %77 = vmatpush.bf16.msra.mxu0 0
    %78 = vmatpush.bf16.msra.mxu0 0
    %79 = vmatpush.bf16.msra.mxu0 %v67
    %80 = vmatmul.bf16.gmra.mxu0 %v70
    %v81 = vpop.f32.mrf.mxu0
    %v82 = vadd.f32 0.0, %v81
    %v83 = vpop.f32.mrf.mxu0
    %v84 = vadd.f32 0.0, %v83
    %85 = vdwg.mxu0
    %v86 = vpack.c.bf16 %v84, %v82
    %v89 = vunpack.c.l.b16 %v55
    %v90 = vunpack.c.l.b16 %v56
    %v91 = vpack.c.b16 %v90, %v89
    %v94 = vsel %vm68, %v86, 0
    %96 = vmatpush.bf16.msra.mxu0 0
    %97 = vmatpush.bf16.msra.mxu0 0
    %98 = vmatpush.bf16.msra.mxu0 0
    %99 = vmatpush.bf16.msra.mxu0 0
    %100 = vmatpush.bf16.msra.mxu0 0
    %101 = vmatpush.bf16.msra.mxu0 0
    %102 = vmatpush.bf16.msra.mxu0 0
    %103 = vmatpush.bf16.msra.mxu0 %v91
    %104 = vmatmul.bf16.gmra.mxu0 %v94
    %v105 = vpop.f32.mrf.mxu0
    %v106 = vadd.f32 0.0, %v105
    %v107 = vpop.f32.mrf.mxu0
    %v108 = vadd.f32 0.0, %v107
    %109 = vdwg.mxu0
    %s110 = scalar_lea.vmem %s2, 16
    %v111 = vld [vmem:[%s110] sm:$0xff]
    %v112 = vld [vmem:[%s110 + $0x8] sm:$0xff]
    %v113 = vpack.c.bf16 %v112, %v111
    %114 = vmatpush.bf16.msra.mxu0 0
    %115 = vmatpush.bf16.msra.mxu0 0
    %116 = vmatpush.bf16.msra.mxu0 0
    %117 = vmatpush.bf16.msra.mxu0 0
    %118 = vmatpush.bf16.msra.mxu0 0
    %119 = vmatpush.bf16.msra.mxu0 0
    %120 = vmatpush.bf16.msra.mxu0 0
    %121 = vmatpush.bf16.msra.mxu0 %v113
    %122 = vmatmul.bf16.gmra.mxu0 %v70
    %v123 = vpop.f32.mrf.mxu0
    %v124 = vadd.f32 0.0, %v123
    %v125 = vpop.f32.mrf.mxu0
    %v126 = vadd.f32 0.0, %v125
    %127 = vdwg.mxu0
    %v128 = vpack.c.bf16 %v126, %v124
    %v130 = vsel %vm68, %v128, 0
    %132 = vmatpush.bf16.msra.mxu0 0
    %133 = vmatpush.bf16.msra.mxu0 0
    %134 = vmatpush.bf16.msra.mxu0 0
    %135 = vmatpush.bf16.msra.mxu0 0
    %136 = vmatpush.bf16.msra.mxu0 0
    %137 = vmatpush.bf16.msra.mxu0 0
    %138 = vmatpush.bf16.msra.mxu0 0
    %139 = vmatpush.bf16.msra.mxu0 %v91
    %140 = vmatmul.bf16.gmra.mxu0 %v130
    %v141 = vpop.f32.mrf.mxu0
    %v142 = vadd.f32 0.0, %v141
    %v143 = vpop.f32.mrf.mxu0
    %v144 = vadd.f32 0.0, %v143
    %145 = vdwg.mxu0
    %s146 = sld [smem:[#allocation2]]
    %v147 = vstv %s146
    %v148 = vmul.f32 %v106, %v147
    %v149 = vmul.f32 %v108, %v147
    %s150 = sld [smem:[#allocation2 + $0x80]]
    %v151 = vstv %s150
    %v152 = vmul.f32 %v142, %v151
    %v153 = vmul.f32 %v144, %v151
    %v154 = vadd.f32 %v148, %v152
    %v155 = vadd.f32 %v149, %v153
    %156 = vst.msk [vmem:[#allocation7] sm:$0xff] %vm68, %v154
    %157 = vst.msk [vmem:[#allocation7 + $0x8] sm:$0xff] %vm68, %v155
    %s158 = sld [smem:[#allocation2 + $0x1]]
    %v159 = vstv %s158
    %v160 = vmul.f32 %v106, %v159
    %v161 = vmul.f32 %v108, %v159
    %s162 = sld [smem:[#allocation2 + $0x81]]
    %v163 = vstv %s162
    %v164 = vmul.f32 %v142, %v163
    %v165 = vmul.f32 %v144, %v163
    %v166 = vadd.f32 %v160, %v164
    %v167 = vadd.f32 %v161, %v165
    %s168 = scalar_lea.vmem [#allocation7], 16
    %169 = vst.msk [vmem:[%s168] sm:$0xff] %vm68, %v166
    %170 = vst.msk [vmem:[%s168 + $0x8] sm:$0xff] %vm68, %v167
    %v171 = vmax.f32 %v154, %v166
    %v172 = vmax.f32 %v155, %v167
    %s173 = sld [smem:[#allocation2 + $0x2]]
    %v174 = vstv %s173
    %v175 = vmul.f32 %v106, %v174
    %v176 = vmul.f32 %v108, %v174
    %s177 = sld [smem:[#allocation2 + $0x82]]
    %v178 = vstv %s177
    %v179 = vmul.f32 %v142, %v178
    %v180 = vmul.f32 %v144, %v178
    %v181 = vadd.f32 %v175, %v179
    %v182 = vadd.f32 %v176, %v180
    %s183 = scalar_lea.vmem [#allocation7], 32
    %184 = vst.msk [vmem:[%s183] sm:$0xff] %vm68, %v181
    %185 = vst.msk [vmem:[%s183 + $0x8] sm:$0xff] %vm68, %v182
    %v186 = vmax.f32 %v171, %v181
    %v187 = vmax.f32 %v172, %v182
    %s188 = sld [smem:[#allocation2 + $0x3]]
    %v189 = vstv %s188
    %v190 = vmul.f32 %v106, %v189
    %v191 = vmul.f32 %v108, %v189
    %s192 = sld [smem:[#allocation2 + $0x83]]
    %v193 = vstv %s192
    %v194 = vmul.f32 %v142, %v193
    %v195 = vmul.f32 %v144, %v193
    %v196 = vadd.f32 %v190, %v194
    %v197 = vadd.f32 %v191, %v195
    %s198 = scalar_lea.vmem [#allocation7], 48
    %199 = vst.msk [vmem:[%s198] sm:$0xff] %vm68, %v196
    %200 = vst.msk [vmem:[%s198 + $0x8] sm:$0xff] %vm68, %v197
    %v201 = vmax.f32 %v186, %v196
    %v202 = vmax.f32 %v187, %v197
    %s203 = sld [smem:[#allocation2 + $0x4]]
    %v204 = vstv %s203
    %v205 = vmul.f32 %v106, %v204
    %v206 = vmul.f32 %v108, %v204
    %s207 = sld [smem:[#allocation2 + $0x84]]
    %v208 = vstv %s207
    %v209 = vmul.f32 %v142, %v208
    %v210 = vmul.f32 %v144, %v208
    %v211 = vadd.f32 %v205, %v209
    %v212 = vadd.f32 %v206, %v210
    %s213 = scalar_lea.vmem [#allocation7], 64
    %214 = vst.msk [vmem:[%s213] sm:$0xff] %vm68, %v211
    %215 = vst.msk [vmem:[%s213 + $0x8] sm:$0xff] %vm68, %v212
    %v216 = vmax.f32 %v201, %v211
    %v217 = vmax.f32 %v202, %v212
    %v218 = vld [vmem:[#allocation7] sm:$0xff]
    %v219 = vld [vmem:[#allocation7 + $0x8] sm:$0xff]
    %v220 = vsub.f32 %v218, %v216
    %v221 = vsub.f32 %v219, %v217
    %v222 = vmul.f32 %v220, 1.442695
    %v223 = vpow.pop %v222
    %v224 = vmul.f32 %v221, 1.442695
    %v225 = vpow.pop %v224
    %v226 = vadd.f32 %v223, 0.0
    %v227 = vadd.f32 %v225, 0.0
    %s228 = sld [smem:[#allocation5]]
    %v229 = vstv %s228
    %v230 = vmul.f32 %v223, %v229
    %v231 = vmul.f32 %v225, %v229
    %v232 = vadd.f32 %v230, 0.0
    %v233 = vadd.f32 %v231, 0.0
    %vm234 = vcmp.eq.s32.totalorder %v57, 0
    %vm235 = vcmp.eq.s32.totalorder %v58, 0
    %v236 = vsel %vm234, %v218, 0.0
    %v237 = vsel %vm235, %v219, 0.0
    %v238 = vsel %vm234, %v229, 0.0
    %v239 = vsel %vm235, %v229, 0.0
    %v240 = vld [vmem:[%s168] sm:$0xff]
    %v241 = vld [vmem:[%s168 + $0x8] sm:$0xff]
    %v242 = vsub.f32 %v240, %v216
    %v243 = vsub.f32 %v241, %v217
    %v244 = vmul.f32 %v242, 1.442695
    %v245 = vpow.pop %v244
    %v246 = vmul.f32 %v243, 1.442695
    %v247 = vpow.pop %v246
    %v248 = vadd.f32 %v226, %v245
    %v249 = vadd.f32 %v227, %v247
    %s250 = sld [smem:[#allocation5 + $0x1]]
    %v251 = vstv %s250
    %v252 = vmul.f32 %v245, %v251
    %v253 = vmul.f32 %v247, %v251
    %v254 = vadd.f32 %v232, %v252
    %v255 = vadd.f32 %v233, %v253
    %vm256 = vcmp.eq.s32.totalorder %v57, 1
    %vm257 = vcmp.eq.s32.totalorder %v58, 1
    %v258 = vsel %vm256, %v240, %v236
    %v259 = vsel %vm257, %v241, %v237
    %v260 = vsel %vm256, %v251, %v238
    %v261 = vsel %vm257, %v251, %v239
    %v262 = vld [vmem:[%s183] sm:$0xff]
    %v263 = vld [vmem:[%s183 + $0x8] sm:$0xff]
    %v264 = vsub.f32 %v262, %v216
    %v265 = vsub.f32 %v263, %v217
    %v266 = vmul.f32 %v264, 1.442695
    %v267 = vpow.pop %v266
    %v268 = vmul.f32 %v265, 1.442695
    %v269 = vpow.pop %v268
    %v270 = vadd.f32 %v248, %v267
    %v271 = vadd.f32 %v249, %v269
    %s272 = sld [smem:[#allocation5 + $0x2]]
    %v273 = vstv %s272
    %v274 = vmul.f32 %v267, %v273
    %v275 = vmul.f32 %v269, %v273
    %v276 = vadd.f32 %v254, %v274
    %v277 = vadd.f32 %v255, %v275
    %vm278 = vcmp.eq.s32.totalorder %v57, 2
    %vm279 = vcmp.eq.s32.totalorder %v58, 2
    %v280 = vsel %vm278, %v262, %v258
    %v281 = vsel %vm279, %v263, %v259
    %v282 = vsel %vm278, %v273, %v260
    %v283 = vsel %vm279, %v273, %v261
    %v284 = vld [vmem:[%s198] sm:$0xff]
    %v285 = vld [vmem:[%s198 + $0x8] sm:$0xff]
    %v286 = vsub.f32 %v284, %v216
    %v287 = vsub.f32 %v285, %v217
    %v288 = vmul.f32 %v286, 1.442695
    %v289 = vpow.pop %v288
    %v290 = vmul.f32 %v287, 1.442695
    %v291 = vpow.pop %v290
    %v292 = vadd.f32 %v270, %v289
    %v293 = vadd.f32 %v271, %v291
    %s294 = sld [smem:[#allocation5 + $0x3]]
    %v295 = vstv %s294
    %v296 = vmul.f32 %v289, %v295
    %v297 = vmul.f32 %v291, %v295
    %v298 = vadd.f32 %v276, %v296
    %v299 = vadd.f32 %v277, %v297
    %vm300 = vcmp.eq.s32.totalorder %v57, 3
    %vm301 = vcmp.eq.s32.totalorder %v58, 3
    %v302 = vsel %vm300, %v284, %v280
    %v303 = vsel %vm301, %v285, %v281
    %v304 = vsel %vm300, %v295, %v282
    %v305 = vsel %vm301, %v295, %v283
    %v306 = vld [vmem:[%s213] sm:$0xff]
    %v307 = vld [vmem:[%s213 + $0x8] sm:$0xff]
    %v308 = vsub.f32 %v306, %v216
    %v309 = vsub.f32 %v307, %v217
    %v310 = vmul.f32 %v308, 1.442695
    %v311 = vpow.pop %v310
    %v312 = vmul.f32 %v309, 1.442695
    %v313 = vpow.pop %v312
    %v314 = vadd.f32 %v292, %v311
    %v315 = vadd.f32 %v293, %v313
    %s316 = sld [smem:[#allocation5 + $0x4]]
    %v317 = vstv %s316
    %v318 = vmul.f32 %v311, %v317
    %v319 = vmul.f32 %v313, %v317
    %v320 = vadd.f32 %v298, %v318
    %v321 = vadd.f32 %v299, %v319
    %vm322 = vcmp.eq.s32.totalorder %v57, 4
    %vm323 = vcmp.eq.s32.totalorder %v58, 4
    %v324 = vsel %vm322, %v306, %v302
    %v325 = vsel %vm323, %v307, %v303
    %v326 = vsel %vm322, %v317, %v304
    %v327 = vsel %vm323, %v317, %v305
    %v328 = vrcp.pop %v314
    %v329 = vmul.f32 %v314, %v328
    %v330 = vsub.f32 1.0, %v329
    %v331 = vmul.f32 %v328, %v330
    %v332 = vadd.f32 %v328, %v331
    %vm333 = vweird.f32 %v314
    %vm334 = vweird.f32 %v328
    %vm335 = vmor %vm333, %vm334
    %v336 = vsel %vm335, %v328, %v332
    %v337 = vand.u32 2147483647, %v314
    %vm338 = vcmp.eq.f32.partialorder %v337, 8.507059e+37
    %v339 = vand.u32 %v314, 2147483648
    %v340 = vor.u32 1.1754944e-38, %v339
    %v341 = vsel %vm338, %v340, %v336
    %v342 = vmul.f32 %v320, %v341
    %v343 = vrcp.pop %v315
    %v344 = vmul.f32 %v315, %v343
    %v345 = vsub.f32 1.0, %v344
    %v346 = vmul.f32 %v343, %v345
    %v347 = vadd.f32 %v343, %v346
    %vm348 = vweird.f32 %v315
    %vm349 = vweird.f32 %v343
    %vm350 = vmor %vm348, %vm349
    %v351 = vsel %vm350, %v343, %v347
    %v352 = vand.u32 2147483647, %v315
    %vm353 = vcmp.eq.f32.partialorder %v352, 8.507059e+37
    %v354 = vand.u32 %v315, 2147483648
    %v355 = vor.u32 1.1754944e-38, %v354
    %v356 = vsel %vm353, %v355, %v351
    %v357 = vmul.f32 %v321, %v356
    %v358 = vlog2.pop %v314
    %v359 = vmul.f32 %v358, 0.6931472
    %v360 = vlog2.pop %v315
    %v361 = vmul.f32 %v360, 0.6931472
    %v362 = vadd.f32 %v216, %v359
    %v363 = vadd.f32 %v217, %v361
    %v364 = vsub.f32 %v362, %v324
    %v365 = vsub.f32 %v363, %v325
    %v366 = vsub.f32 %v342, %v326
    %v367 = vsub.f32 %v357, %v327
    %v368 = vmul.f32 %v364, %v63
    %v369 = vmul.f32 %v365, %v64
    %v370 = vsel %vm68, %v368, 0.0
    %v371 = vsel %vm68, %v369, 0.0
    %v372 = vadd.f32 %v370, %v371
    %373 = vadd.xlane.f32.xlu0 %v372
    %v374 = vpop.xlane.xlu0 %373
    %v375 = vrot.slane %v374, 4
    %v376 = vadd.f32 %v374, %v375
    %v377 = vrot.slane %v376, 2
    %v378 = vadd.f32 %v376, %v377
    %v379 = vrot.slane %v378, 1
    %v380 = vadd.f32 %v378, %v379
    %s381 = vtos %v380
    %v382 = vmul.f32 %v366, %v366
    %v383 = vmul.f32 %v367, %v367
    %v384 = vmul.f32 %v382, %v63
    %v385 = vmul.f32 %v383, %v64
    %v386 = vsel %vm68, %v384, 0.0
    %v387 = vsel %vm68, %v385, 0.0
    %v388 = vadd.f32 %v386, %v387
    %389 = vadd.xlane.f32.xlu0 %v388
    %v390 = vpop.xlane.xlu0 %389
    %v391 = vrot.slane %v390, 4
    %v392 = vadd.f32 %v390, %v391
    %v393 = vrot.slane %v392, 2
    %v394 = vadd.f32 %v392, %v393
    %v395 = vrot.slane %v394, 1
    %v396 = vadd.f32 %v394, %v395
    %s397 = vtos %v396
    %v398 = vlaneseq
    %v399 = vand.u32 %v398, 127
    %vm400 = vcmp.eq.s32.totalorder %v399, 0
    %v401 = vsel %vm400, 1, 0
    %v402 = vcvt.s32.f32 %v401
    %v403 = vstv %s381
    %v404 = vmul.f32 %v403, %v402
    %vm405 = vcmp.eq.s32.totalorder %v399, 1
    %v406 = vsel %vm405, 1, 0
    %v407 = vcvt.s32.f32 %v406
    %v408 = vstv %s397
    %v409 = vmul.f32 %v408, %v407
    %v410 = vadd.f32 %v404, %v409
    %411 = vst [vmem:[%s7] sm:$0x1] %v410
    // Predicated region
    $region34: #{amg_forward.19} parent=1 // pred_check
      _
    $region35: #{amg_forward.19} parent=1 // pred_check_branch
      %413 = sbr.rel (0) target = $region37
    $region36: #{amg_forward.19} parent=1 // pred_region
      %415 = vsyncadd [#allocation3], 0
      %s416 = sshll.u32 [#allocation7], 4
      %s417 = int_to_ptr.vmem [resolvable:$true] %s416
      %s418 = sshll.u32 %s6, 4
      %s419 = int_to_ptr.hbm [resolvable:$true] %s418
      %424 = dma.vmem_to_hbm [thread:$0]  %s417, 1280, %s419, [#allocation3], 128, 128, 8
    $region37: #{amg_forward.19} parent=1 // pred_fallthru
      _
    // Predicated region
    $region38: #{amg_forward.19} parent=1 // pred_check
      _
    $region39: #{amg_forward.19} parent=1 // pred_check_branch
      %426 = sbr.rel (0) target = $region41
    $region40: #{amg_forward.19} parent=1 // pred_region
      _
    $region41: #{amg_forward.19} parent=1 // pred_fallthru
      _
    // Predicated region
    $region42: #{amg_forward.19} parent=1 // pred_check
      _
    $region43: #{amg_forward.19} parent=1 // pred_check_branch
      %428 = sbr.rel (0) target = $region45
    $region44: #{amg_forward.19} parent=1 // pred_region
      %430 = dma.done [#allocation3], 1280
    $region45: #{amg_forward.19} parent=1 // pred_fallthru
      _
    // Predicated region
    $region46: #{amg_forward.19} parent=1 // pred_check
      _
    $region47: #{amg_forward.19} parent=1 // pred_check_branch
      %432 = sbr.rel (0) target = $region49
    $region48: #{amg_forward.19} parent=1 // pred_region
      _
    $region49: #{amg_forward.19} parent=1 // pred_fallthru
      _
    %433 = vsyncpa [#allocation3], 1
    %434 = vsyncpa [#allocation4], 1
    %435 = vsyncpa [#allocation6], 1

</llo_original>
